<compile_context>
chip_gen: v5e
topology: v5e:2x2
jax: 0.10.0
libtpu: 0.0.40
codegen_flags: <defaults>
</compile_context>

<pallas_src>
import math

import jax
import jax.numpy as jnp
from jax.experimental import pallas as pl
from jax.experimental.pallas import tpu as pltpu


# ------------------------------ small helpers -------------------------------

def _round_up(x, m):
    return (x + m - 1) // m * m


def _pad_dim(a, axis, target):
    """Zero-pad `a` along `axis` up to `target` (no-op if already big enough)."""
    pad = target - a.shape[axis]
    if pad <= 0:
        return a
    widths = [(0, 0)] * a.ndim
    widths[axis] = (0, pad)
    return jnp.pad(a, widths)


def _pad_gates(w, h, hp):
    """Pad the trailing 4*H gate axis to 4*Hp, padding each (i,f,g,o) gate
    block separately so gate slices stay contiguous and 128-lane aligned."""
    if hp == h:
        return w
    lead = w.shape[:-1]
    w4 = w.reshape(lead + (4, h))
    w4 = _pad_dim(w4, w4.ndim - 1, hp)
    return w4.reshape(lead + (4 * hp,))


def _num_tensorcores():
    """2 on chips exposing two TensorCores per device (v7x), else 1."""
    try:
        kind = jax.devices()[0].device_kind.lower()
        if "v7" in kind:
            return 2
    except Exception:
        pass
    return 1


def _pick_batch_blocks(batch):
    """Pad batch to a sublane multiple and choose the per-grid-step block.

    Large batches split into 128-row blocks; on dual-TensorCore chips (v7x)
    the batch is split into >= 2 blocks (when big enough) so the 'parallel'
    grid axis actually shards across both cores."""
    bp = _round_up(batch, 8)
    if bp > 128:
        bp = _round_up(bp, 128)
        return bp, 128
    if _num_tensorcores() >= 2 and bp >= 16:
        blk = _round_up((bp + 1) // 2, 8)
        return _round_up(bp, blk), blk
    return bp, bp


def _vmem_budget_bytes():
    """~75% of this generation's physical VMEM (conservative fallback)."""
    try:
        cap = int(pltpu.get_tpu_info().vmem_capacity_bytes)
    except Exception:
        cap = 64 * 1024 * 1024          # v7x-sized fallback, safe everywhere
    return int(cap * 0.75)


def _pick_time_block(t, bb, hp, ip, budget_bytes, target=32):
    """Largest time block <= min(target, t) whose VMEM footprint fits."""
    bf16, f32 = 2, 4
    fixed = (ip * 4 * hp * bf16            # W_ih (single resident copy)
             + hp * 4 * hp * bf16          # W_hh (single resident copy)
             + 4 * hp * f32                # bias
             + 4 * 2 * bb * hp * f32       # h0/c0/hN/cN blocks (double-buffered)
             + bb * hp * (bf16 + f32))     # h/c carry scratch
    per_t = (bb * ip * bf16 * 2            # x block   (double-buffered)
             + bb * hp * bf16 * 2          # out block (double-buffered)
             + bb * 4 * hp * f32)          # gx scratch (f32, single copy)
    tb = max(1, min(target, t))
    while tb > 1 and (fixed + tb * per_t) * 1.25 > budget_bytes:
        tb -= 1
    return tb


# ------------------------------ Pallas kernel --------------------------------

def _make_lstm_kernel(seq_len, time_block):
    """Fused input-projection + recurrence kernel for one LSTM layer.

    Block shapes (Hp = padded hidden, Ip = padded input, Bb = batch block,
    Tb = time block):
      x_ref   : (Tb, Bb, Ip)   bf16  input slice for this (time, batch) block
      wih_ref : (Ip, 4*Hp)     bf16  input weights     (whole array, VMEM-resident)
      whh_ref : (Hp, 4*Hp)     bf16  recurrent weights (whole array, VMEM-resident)
      bias_ref: (1, 4*Hp)      f32   b_ih + b_hh       (whole array, VMEM-resident)
      h0_ref  : (Bb, Hp)       f32   initial hidden state of this batch block
      c0_ref  : (Bb, Hp)       f32
      out_ref : (Tb, Bb, Hp)   bf16  hidden-state sequence
      hN_ref  : (Bb, Hp)       f32   final hidden state
      cN_ref  : (Bb, Hp)       f32   final cell state
      gx_scr  : (Tb, Bb, 4*Hp) f32   fused x @ W_ih^T + bias (never hits HBM)
      h_scr   : (Bb, Hp)       bf16  h carried across time blocks (matmul LHS)
      c_scr   : (Bb, Hp)       f32   c carried across time blocks
    """
    needs_mask = (seq_len % time_block) != 0

    def kernel(x_ref, wih_ref, whh_ref, bias_ref, h0_ref, c0_ref,
               out_ref, hN_ref, cN_ref, gx_scr, h_scr, c_scr):
        t_blk = pl.program_id(1)

        @pl.when(t_blk == 0)
        def _():
            h_scr[...] = h0_ref[...].astype(h_scr.dtype)
            c_scr[...] = c0_ref[...].astype(c_scr.dtype)

        tb, bb, ip = x_ref.shape
        hp = h_scr.shape[-1]

        # Fused input projection: one big MXU GEMM over tb*bb rows, f32
        # accumulation + bias, kept entirely in VMEM.
        x_blk = x_ref[...].reshape(tb * bb, ip)
        gx = jnp.dot(x_blk, wih_ref[...], preferred_element_type=jnp.float32)
        gx_scr[...] = (gx + bias_ref[...]).reshape(tb, bb, 4 * hp)

        whh = whh_ref[...]                     # (Hp, 4Hp) bf16, resident copy

        def step(t, carry):
            h_bf, c_prev = carry               # bf16 matmul LHS, f32 cell state
            gates = gx_scr[t] + jnp.dot(h_bf, whh,
                                        preferred_element_type=jnp.float32)
            # sigmoid(x) = 0.5*tanh(0.5*x)+0.5 : one EUP push per gate.
            i_g = 0.5 * jnp.tanh(0.5 * gates[:, 0 * hp:1 * hp]) + 0.5
            f_g = 0.5 * jnp.tanh(0.5 * gates[:, 1 * hp:2 * hp]) + 0.5
            g_g = jnp.tanh(gates[:, 2 * hp:3 * hp])
            o_g = 0.5 * jnp.tanh(0.5 * gates[:, 3 * hp:4 * hp]) + 0.5
            c_new = f_g * c_prev + i_g * g_g
            h_new = o_g * jnp.tanh(c_new)
            if needs_mask:                     # only present when T % Tb != 0
                valid = (t_blk * tb + t) < seq_len
                c_new = jnp.where(valid, c_new, c_prev)
                h_new = jnp.where(valid, h_new, h_bf.astype(jnp.float32))
            out_ref[t] = h_new.astype(out_ref.dtype)
            return h_new.astype(jnp.bfloat16), c_new

        h_fin, c_fin = jax.lax.fori_loop(
            0, tb, step, (h_scr[...], c_scr[...]), unroll=True)

        h_scr[...] = h_fin
        c_scr[...] = c_fin

        # hN/cN map to the same output block for every time step; they are only
        # written here and the (revisited) block is written back when the
        # batch-block index changes / the grid ends, i.e. after this write.
        @pl.when(t_blk == pl.num_programs(1) - 1)
        def _():
            hN_ref[...] = h_fin.astype(hN_ref.dtype)
            cN_ref[...] = c_fin.astype(cN_ref.dtype)

    return kernel


def lstm_layer(x_stream, wih_t, whh_t, bias, h0, c0, *, seq_len, block_b,
               time_block=32):
    """One LSTM layer over a padded bf16 stream.

    x_stream: (T, Bp, Ip) bf16   wih_t: (Ip, 4*Hp) bf16   whh_t: (Hp, 4*Hp) bf16
    bias: (1, 4*Hp) f32          h0, c0: (Bp, Hp) f32
    Returns (out (T, Bp, Hp) bf16, hN (Bp, Hp) f32, cN (Bp, Hp) f32).
    """
    T, Bp, Ip = x_stream.shape
    Hp = whh_t.shape[0]
    assert T == seq_len and Bp % block_b == 0

    budget = _vmem_budget_bytes()
    tb = _pick_time_block(seq_len, block_b, Hp, Ip, budget, target=time_block)
    Tp = _round_up(seq_len, tb)
    x_stream = _pad_dim(x_stream, 0, Tp)
    n_bb = Bp // block_b
    n_tb = Tp // tb

    grid_spec = pltpu.PrefetchScalarGridSpec(
        num_scalar_prefetch=0,
        grid=(n_bb, n_tb),                     # batch blocks outer, time inner
        in_specs=[
            pl.BlockSpec((tb, block_b, Ip), lambda b, t: (t, b, 0)),   # x
            pl.BlockSpec(memory_space=pltpu.MemorySpace.VMEM),         # W_ih
            pl.BlockSpec(memory_space=pltpu.MemorySpace.VMEM),         # W_hh
            pl.BlockSpec(memory_space=pltpu.MemorySpace.VMEM),         # bias
            pl.BlockSpec((block_b, Hp), lambda b, t: (b, 0)),          # h0
            pl.BlockSpec((block_b, Hp), lambda b, t: (b, 0)),          # c0
        ],
        out_specs=[
            pl.BlockSpec((tb, block_b, Hp), lambda b, t: (t, b, 0)),   # out seq
            pl.BlockSpec((block_b, Hp), lambda b, t: (b, 0)),          # final h
            pl.BlockSpec((block_b, Hp), lambda b, t: (b, 0)),          # final c
        ],
        scratch_shapes=[
            pltpu.VMEM((tb, block_b, 4 * Hp), jnp.float32),            # gx
            pltpu.VMEM((block_b, Hp), jnp.bfloat16),                   # h carry
            pltpu.VMEM((block_b, Hp), jnp.float32),                    # c carry
        ],
    )
    out_shapes = (
        jax.ShapeDtypeStruct((Tp, Bp, Hp), jnp.bfloat16),
        jax.ShapeDtypeStruct((Bp, Hp), jnp.float32),
        jax.ShapeDtypeStruct((Bp, Hp), jnp.float32),
    )

    out, hN, cN = pl.pallas_call(
        _make_lstm_kernel(seq_len, tb),
        out_shape=out_shapes,
        grid_spec=grid_spec,
        compiler_params=pltpu.CompilerParams(
            # batch blocks are independent (v7x megacore); time is sequential.
            dimension_semantics=("parallel", "arbitrary"),
            vmem_limit_bytes=budget),
    )(x_stream, wih_t, whh_t, bias, h0, c0)
    return out[:seq_len], hN, cN


# ------------------------------ parameters -----------------------------------

def init_lstm_params(key, input_size, hidden_size, dtype=jnp.float32):
    """Deterministic init mirroring torch.nn.LSTMCell's U(-1/sqrt(H), 1/sqrt(H))."""
    stdv = 1.0 / math.sqrt(hidden_size)
    k1, k2, k3, k4 = jax.random.split(key, 4)
    w_ih = jax.random.uniform(k1, (4 * hidden_size, input_size), dtype, -stdv, stdv)
    w_hh = jax.random.uniform(k2, (4 * hidden_size, hidden_size), dtype, -stdv, stdv)
    b_ih = jax.random.uniform(k3, (4 * hidden_size,), dtype, -stdv, stdv)
    b_hh = jax.random.uniform(k4, (4 * hidden_size,), dtype, -stdv, stdv)
    return {
        "wih_t": w_ih.T,                 # (I, 4H)
        "whh_t": w_hh.T,                 # (H, 4H)
        "bias": b_ih + b_hh,             # (4H,)  (pre-summed)
        "hidden_size": hidden_size,
    }


# ------------------------------ stacked forward -------------------------------

def stacked_lstm_forward(params_list, x, states=None, *, time_block=32):
    """Equivalent of StackedLSTM.forward.

    x: (T, B, I) time-major. Returns (output (T, B, H_last), [(h, c), ...]).
    """
    T, B, I = x.shape
    in_dtype = x.dtype
    if states is None:
        states = [(jnp.zeros((B, p["hidden_size"]), in_dtype),
                   jnp.zeros((B, p["hidden_size"]), in_dtype))
                  for p in params_list]

    Bp, block_b = _pick_batch_blocks(B)

    # bf16 activation stream between layers; batch / feature padded up front.
    width = _round_up(I, 128)
    stream = _pad_dim(_pad_dim(x, 1, Bp), 2, width).astype(jnp.bfloat16)

    output_states = []
    for p, (h0, c0) in zip(params_list, states):
        H = p["hidden_size"]
        Hp = _round_up(H, 128)

        # Pad weights: per-gate H->Hp on the gate axis, rows to the padded
        # stream width / Hp.  Zero padding keeps padded hidden units exactly 0.
        wih_t = _pad_dim(_pad_gates(p["wih_t"], H, Hp), 0, width).astype(jnp.bfloat16)
        whh_t = _pad_dim(_pad_gates(p["whh_t"], H, Hp), 0, Hp).astype(jnp.bfloat16)
        bias = _pad_gates(p["bias"], H, Hp).astype(jnp.float32).reshape(1, 4 * Hp)
        h0p = _pad_dim(_pad_dim(h0.astype(jnp.float32), 0, Bp), 1, Hp)
        c0p = _pad_dim(_pad_dim(c0.astype(jnp.float32), 0, Bp), 1, Hp)

        stream, hN, cN = lstm_layer(
            stream, wih_t, whh_t, bias, h0p, c0p,
            seq_len=T, block_b=block_b, time_block=time_block)

        # Padded batch rows of hN/cN contain bias-driven garbage; slice them
        # off here and never feed padded states back unsliced.
        output_states.append((hN[:B, :H].astype(in_dtype),
                              cN[:B, :H].astype(in_dtype)))
        width = Hp                       # next layer consumes (T, Bp, Hp) bf16

    H_last = params_list[-1]["hidden_size"]
    output = stream[:, :B, :H_last].astype(in_dtype)
    return output, output_states


# ------------------------------ pure-JAX reference ----------------------------

def stacked_lstm_ref(params_list, x, states=None):
    T, B, _ = x.shape
    if states is None:
        states = [(jnp.zeros((B, p["hidden_size"]), x.dtype),
                   jnp.zeros((B, p["hidden_size"]), x.dtype))
                  for p in params_list]
    output = x
    out_states = []
    for p, (h0, c0) in zip(params_list, states):
        H = p["hidden_size"]
        wih_t, whh_t, bias = p["wih_t"], p["whh_t"], p["bias"]

        def step(carry, x_t, wih_t=wih_t, whh_t=whh_t, bias=bias, H=H):
            h, c = carry
            g = x_t @ wih_t + h @ whh_t + bias
            i = jax.nn.sigmoid(g[:, 0 * H:1 * H])
            f = jax.nn.sigmoid(g[:, 1 * H:2 * H])
            gg = jnp.tanh(g[:, 2 * H:3 * H])
            o = jax.nn.sigmoid(g[:, 3 * H:4 * H])
            c = f * c + i * gg
            h = o * jnp.tanh(c)
            return (h, c), h

        (hN, cN), ys = jax.lax.scan(step, (h0, c0), output)
        output = ys
        out_states.append((hN, cN))
    return output, out_states


# ------------------------------ example --------------------------------------

if __name__ == "__main__":
    # Small deterministic example: 2 stacked layers exercising the batch
    # (6 -> 8), hidden (96 -> 128) and input-feature (80 -> 128) padding paths.
    num_layers = 2
    seq_len = 12
    batch = 6
    input_size = 80
    hidden_size = 96

    root = jax.random.PRNGKey(0)
    k_in, k_l0, k_l1 = jax.random.split(root, 3)

    params = [init_lstm_params(k_l0, input_size, hidden_size),
              init_lstm_params(k_l1, hidden_size, hidden_size)][:num_layers]

    x = jax.random.normal(k_in, (seq_len, batch, input_size), jnp.float32)

    ref_out, ref_states = stacked_lstm_ref(params, x, states=None)

    # Run twice: default time blocking (tb == T here) and tb=8, which pads the
    # time axis (T=12 -> Tp=16) and exercises the masked-tail path.
    for tb in (32, 8):
        output, out_states = stacked_lstm_forward(params, x, states=None,
                                                  time_block=tb)
        output = jax.block_until_ready(output)
        for h, c in out_states:
            jax.block_until_ready(h)
            jax.block_until_ready(c)

        assert output.shape == (seq_len, batch, hidden_size)
        assert all(h.shape == (batch, hidden_size) and
                   c.shape == (batch, hidden_size) for h, c in out_states)

        # Sanity check vs. a pure-JAX f32 reference (loose tolerance: bf16 MXU
        # operands and bf16 inter-layer activations).
        assert float(jnp.max(jnp.abs(output - ref_out))) < 1e-1
        for (h, c), (hr, cr) in zip(out_states, ref_states):
            assert float(jnp.max(jnp.abs(h - hr))) < 1e-1
            assert float(jnp.max(jnp.abs(c - cr))) < 1e-1

    print("KERNEL_OK")
</pallas_src>

<mosaic_0001>
module attributes {stable_mosaic.version = 11 : i64} {
  func.func @kernel(%arg0: i32, %arg1: i32, %arg2: memref<12x8x128xbf16, #tpu.memory_space<vmem>>, %arg3: memref<128x512xbf16, #tpu.memory_space<vmem>>, %arg4: memref<128x512xbf16, #tpu.memory_space<vmem>>, %arg5: memref<1x512xf32, #tpu.memory_space<vmem>>, %arg6: memref<8x128xf32, #tpu.memory_space<vmem>>, %arg7: memref<8x128xf32, #tpu.memory_space<vmem>>, %arg8: memref<12x8x128xbf16, #tpu.memory_space<vmem>>, %arg9: memref<8x128xf32, #tpu.memory_space<vmem>>, %arg10: memref<8x128xf32, #tpu.memory_space<vmem>>, %arg11: memref<12x8x512xf32, #tpu.memory_space<vmem>>, %arg12: memref<8x128xbf16, #tpu.memory_space<vmem>>, %arg13: memref<8x128xf32, #tpu.memory_space<vmem>>) attributes {dimension_semantics = [#tpu.dimension_semantics<parallel>, #tpu.dimension_semantics<arbitrary>], iteration_bounds = array<i64: 1, 1>, scalar_prefetch = 0 : i64, scratch_operands = 3 : i64, tpu.core_type = #tpu.core_type<tc>, window_params = [{transform_indices = @transform_0, window_bounds = array<i64: 12, 8, 128>}, {pipeline_mode = #tpu.pipeline_mode<synchronous>, transform_indices = @transform_1, window_bounds = array<i64: 128, 512>}, {pipeline_mode = #tpu.pipeline_mode<synchronous>, transform_indices = @transform_2, window_bounds = array<i64: 128, 512>}, {pipeline_mode = #tpu.pipeline_mode<synchronous>, transform_indices = @transform_3, window_bounds = array<i64: 1, 512>}, {transform_indices = @transform_4, window_bounds = array<i64: 8, 128>}, {transform_indices = @transform_5, window_bounds = array<i64: 8, 128>}, {transform_indices = @transform_6, window_bounds = array<i64: 12, 8, 128>}, {transform_indices = @transform_7, window_bounds = array<i64: 8, 128>}, {transform_indices = @transform_8, window_bounds = array<i64: 8, 128>}]} {
    %c0_i32 = arith.constant 0 : i32
    %0 = arith.cmpi eq, %arg1, %c0_i32 : i32
    %1 = arith.extui %0 : i1 to i32
    %c0_i32_0 = arith.constant 0 : i32
    %2 = arith.cmpi ne, %1, %c0_i32_0 : i32
    scf.if %2 {
      %c0_191 = arith.constant 0 : index
      %c0_192 = arith.constant 0 : index
      %524 = vector.load %arg6[%c0_191, %c0_192] : memref<8x128xf32, #tpu.memory_space<vmem>>, vector<8x128xf32>
      %525 = arith.truncf %524 : vector<8x128xf32> to vector<8x128xbf16>
      %c0_193 = arith.constant 0 : index
      %c0_194 = arith.constant 0 : index
      %526 = vector.load %arg12[%c0_193, %c0_194] : memref<8x128xbf16, #tpu.memory_space<vmem>>, vector<8x128xbf16>
      tpu.vector_store %arg12[%c0_193, %c0_194], %525 {strides = array<i32>} : memref<8x128xbf16, #tpu.memory_space<vmem>>, vector<8x128xbf16>,
      %c0_195 = arith.constant 0 : index
      %c0_196 = arith.constant 0 : index
      %527 = vector.load %arg7[%c0_195, %c0_196] : memref<8x128xf32, #tpu.memory_space<vmem>>, vector<8x128xf32>
      %c0_197 = arith.constant 0 : index
      %c0_198 = arith.constant 0 : index
      %528 = vector.load %arg13[%c0_197, %c0_198] : memref<8x128xf32, #tpu.memory_space<vmem>>, vector<8x128xf32>
      tpu.vector_store %arg13[%c0_197, %c0_198], %527 {strides = array<i32>} : memref<8x128xf32, #tpu.memory_space<vmem>>, vector<8x128xf32>,
    } else {
    }
    %c0 = arith.constant 0 : index
    %c0_1 = arith.constant 0 : index
    %c0_2 = arith.constant 0 : index
    %3 = vector.load %arg2[%c0, %c0_1, %c0_2] : memref<12x8x128xbf16, #tpu.memory_space<vmem>>, vector<12x8x128xbf16>
    %4 = vector.shape_cast %3 : vector<12x8x128xbf16> to vector<96x128xbf16>
    %c0_3 = arith.constant 0 : index
    %c0_4 = arith.constant 0 : index
    %5 = vector.load %arg3[%c0_3, %c0_4] : memref<128x512xbf16, #tpu.memory_space<vmem>>, vector<128x512xbf16>
    %cst = arith.constant dense<0.000000e+00> : vector<96x512xf32>
    %6 = tpu.matmul %4, %5, %cst {dimension_numbers = #tpu.dot_dimension_numbers<[1], [0], [0], [1], [0, 0, 1, 1], [], []>} : vector<96x128xbf16>, vector<128x512xbf16>, vector<96x512xf32> -> vector<96x512xf32>
    %c0_5 = arith.constant 0 : index
    %c0_6 = arith.constant 0 : index
    %7 = vector.load %arg5[%c0_5, %c0_6] : memref<1x512xf32, #tpu.memory_space<vmem>>, vector<1x512xf32>
    %8 = vector.broadcast %7 : vector<1x512xf32> to vector<96x512xf32>
    %9 = arith.addf %6, %8 : vector<96x512xf32>
    %10 = vector.shape_cast %9 : vector<96x512xf32> to vector<12x8x512xf32>
    %c0_7 = arith.constant 0 : index
    %c0_8 = arith.constant 0 : index
    %c0_9 = arith.constant 0 : index
    %11 = vector.load %arg11[%c0_7, %c0_8, %c0_9] : memref<12x8x512xf32, #tpu.memory_space<vmem>>, vector<12x8x512xf32>
    tpu.vector_store %arg11[%c0_7, %c0_8, %c0_9], %10 {strides = array<i32>} : memref<12x8x512xf32, #tpu.memory_space<vmem>>, vector<12x8x512xf32>,
    %c0_10 = arith.constant 0 : index
    %c0_11 = arith.constant 0 : index
    %12 = vector.load %arg4[%c0_10, %c0_11] : memref<128x512xbf16, #tpu.memory_space<vmem>>, vector<128x512xbf16>
    %c0_12 = arith.constant 0 : index
    %c0_13 = arith.constant 0 : index
    %13 = vector.load %arg12[%c0_12, %c0_13] : memref<8x128xbf16, #tpu.memory_space<vmem>>, vector<8x128xbf16>
    %c0_14 = arith.constant 0 : index
    %c0_15 = arith.constant 0 : index
    %14 = vector.load %arg13[%c0_14, %c0_15] : memref<8x128xf32, #tpu.memory_space<vmem>>, vector<8x128xf32>
    %c0_i32_16 = arith.constant 0 : i32
    %15 = arith.index_cast %c0_i32_16 : i32 to index
    %c0_17 = arith.constant 0 : index
    %c0_18 = arith.constant 0 : index
    %16 = vector.load %arg11[%15, %c0_17, %c0_18] : memref<12x8x512xf32, #tpu.memory_space<vmem>>, vector<1x8x512xf32>
    %17 = vector.shape_cast %16 : vector<1x8x512xf32> to vector<8x512xf32>
    %cst_19 = arith.constant dense<0.000000e+00> : vector<8x512xf32>
    %18 = tpu.matmul %13, %12, %cst_19 {dimension_numbers = #tpu.dot_dimension_numbers<[1], [0], [0], [1], [0, 0, 1, 1], [], []>} : vector<8x128xbf16>, vector<128x512xbf16>, vector<8x512xf32> -> vector<8x512xf32>
    %19 = arith.addf %17, %18 : vector<8x512xf32>
    %20 = vector.extract_strided_slice %19 {offsets = [0, 0], sizes = [8, 128], strides = [1, 1]} : vector<8x512xf32> to vector<8x128xf32>
    %cst_20 = arith.constant 5.000000e-01 : f32
    %21 = vector.broadcast %cst_20 : f32 to vector<8x128xf32>
    %22 = arith.mulf %21, %20 : vector<8x128xf32>
    %23 = math.tanh %22 : vector<8x128xf32>
    %cst_21 = arith.constant 5.000000e-01 : f32
    %24 = vector.broadcast %cst_21 : f32 to vector<8x128xf32>
    %25 = arith.mulf %24, %23 : vector<8x128xf32>
    %cst_22 = arith.constant 5.000000e-01 : f32
    %26 = vector.broadcast %cst_22 : f32 to vector<8x128xf32>
    %27 = arith.addf %25, %26 : vector<8x128xf32>
    %28 = vector.extract_strided_slice %19 {offsets = [0, 128], sizes = [8, 128], strides = [1, 1]} : vector<8x512xf32> to vector<8x128xf32>
    %cst_23 = arith.constant 5.000000e-01 : f32
    %29 = vector.broadcast %cst_23 : f32 to vector<8x128xf32>
    %30 = arith.mulf %29, %28 : vector<8x128xf32>
    %31 = math.tanh %30 : vector<8x128xf32>
    %cst_24 = arith.constant 5.000000e-01 : f32
    %32 = vector.broadcast %cst_24 : f32 to vector<8x128xf32>
    %33 = arith.mulf %32, %31 : vector<8x128xf32>
    %cst_25 = arith.constant 5.000000e-01 : f32
    %34 = vector.broadcast %cst_25 : f32 to vector<8x128xf32>
    %35 = arith.addf %33, %34 : vector<8x128xf32>
    %36 = vector.extract_strided_slice %19 {offsets = [0, 256], sizes = [8, 128], strides = [1, 1]} : vector<8x512xf32> to vector<8x128xf32>
    %37 = math.tanh %36 : vector<8x128xf32>
    %38 = vector.extract_strided_slice %19 {offsets = [0, 384], sizes = [8, 128], strides = [1, 1]} : vector<8x512xf32> to vector<8x128xf32>
    %cst_26 = arith.constant 5.000000e-01 : f32
    %39 = vector.broadcast %cst_26 : f32 to vector<8x128xf32>
    %40 = arith.mulf %39, %38 : vector<8x128xf32>
    %41 = math.tanh %40 : vector<8x128xf32>
    %cst_27 = arith.constant 5.000000e-01 : f32
    %42 = vector.broadcast %cst_27 : f32 to vector<8x128xf32>
    %43 = arith.mulf %42, %41 : vector<8x128xf32>
    %cst_28 = arith.constant 5.000000e-01 : f32
    %44 = vector.broadcast %cst_28 : f32 to vector<8x128xf32>
    %45 = arith.addf %43, %44 : vector<8x128xf32>
    %46 = arith.mulf %35, %14 : vector<8x128xf32>
    %47 = arith.mulf %27, %37 : vector<8x128xf32>
    %48 = arith.addf %46, %47 : vector<8x128xf32>
    %49 = math.tanh %48 : vector<8x128xf32>
    %50 = arith.mulf %45, %49 : vector<8x128xf32>
    %51 = arith.truncf %50 : vector<8x128xf32> to vector<8x128xbf16>
    %52 = arith.index_cast %c0_i32_16 : i32 to index
    %c0_29 = arith.constant 0 : index
    %c0_30 = arith.constant 0 : index
    %53 = vector.load %arg8[%52, %c0_29, %c0_30] : memref<12x8x128xbf16, #tpu.memory_space<vmem>>, vector<1x8x128xbf16>
    %54 = vector.shape_cast %53 : vector<1x8x128xbf16> to vector<8x128xbf16>
    %55 = vector.shape_cast %51 : vector<8x128xbf16> to vector<1x8x128xbf16>
    tpu.vector_store %arg8[%52, %c0_29, %c0_30], %55 {strides = array<i32>} : memref<12x8x128xbf16, #tpu.memory_space<vmem>>, vector<1x8x128xbf16>,
    %56 = arith.truncf %50 : vector<8x128xf32> to vector<8x128xbf16>
    %c1_i32 = arith.constant 1 : i32
    %57 = arith.index_cast %c1_i32 : i32 to index
    %c0_31 = arith.constant 0 : index
    %c0_32 = arith.constant 0 : index
    %58 = vector.load %arg11[%57, %c0_31, %c0_32] : memref<12x8x512xf32, #tpu.memory_space<vmem>>, vector<1x8x512xf32>
    %59 = vector.shape_cast %58 : vector<1x8x512xf32> to vector<8x512xf32>
    %cst_33 = arith.constant dense<0.000000e+00> : vector<8x512xf32>
    %60 = tpu.matmul %56, %12, %cst_33 {dimension_numbers = #tpu.dot_dimension_numbers<[1], [0], [0], [1], [0, 0, 1, 1], [], []>} : vector<8x128xbf16>, vector<128x512xbf16>, vector<8x512xf32> -> vector<8x512xf32>
    %61 = arith.addf %59, %60 : vector<8x512xf32>
    %62 = vector.extract_strided_slice %61 {offsets = [0, 0], sizes = [8, 128], strides = [1, 1]} : vector<8x512xf32> to vector<8x128xf32>
    %cst_34 = arith.constant 5.000000e-01 : f32
    %63 = vector.broadcast %cst_34 : f32 to vector<8x128xf32>
    %64 = arith.mulf %63, %62 : vector<8x128xf32>
    %65 = math.tanh %64 : vector<8x128xf32>
    %cst_35 = arith.constant 5.000000e-01 : f32
    %66 = vector.broadcast %cst_35 : f32 to vector<8x128xf32>
    %67 = arith.mulf %66, %65 : vector<8x128xf32>
    %cst_36 = arith.constant 5.000000e-01 : f32
    %68 = vector.broadcast %cst_36 : f32 to vector<8x128xf32>
    %69 = arith.addf %67, %68 : vector<8x128xf32>
    %70 = vector.extract_strided_slice %61 {offsets = [0, 128], sizes = [8, 128], strides = [1, 1]} : vector<8x512xf32> to vector<8x128xf32>
    %cst_37 = arith.constant 5.000000e-01 : f32
    %71 = vector.broadcast %cst_37 : f32 to vector<8x128xf32>
    %72 = arith.mulf %71, %70 : vector<8x128xf32>
    %73 = math.tanh %72 : vector<8x128xf32>
    %cst_38 = arith.constant 5.000000e-01 : f32
    %74 = vector.broadcast %cst_38 : f32 to vector<8x128xf32>
    %75 = arith.mulf %74, %73 : vector<8x128xf32>
    %cst_39 = arith.constant 5.000000e-01 : f32
    %76 = vector.broadcast %cst_39 : f32 to vector<8x128xf32>
    %77 = arith.addf %75, %76 : vector<8x128xf32>
    %78 = vector.extract_strided_slice %61 {offsets = [0, 256], sizes = [8, 128], strides = [1, 1]} : vector<8x512xf32> to vector<8x128xf32>
    %79 = math.tanh %78 : vector<8x128xf32>
    %80 = vector.extract_strided_slice %61 {offsets = [0, 384], sizes = [8, 128], strides = [1, 1]} : vector<8x512xf32> to vector<8x128xf32>
    %cst_40 = arith.constant 5.000000e-01 : f32
    %81 = vector.broadcast %cst_40 : f32 to vector<8x128xf32>
    %82 = arith.mulf %81, %80 : vector<8x128xf32>
    %83 = math.tanh %82 : vector<8x128xf32>
    %cst_41 = arith.constant 5.000000e-01 : f32
    %84 = vector.broadcast %cst_41 : f32 to vector<8x128xf32>
    %85 = arith.mulf %84, %83 : vector<8x128xf32>
    %cst_42 = arith.constant 5.000000e-01 : f32
    %86 = vector.broadcast %cst_42 : f32 to vector<8x128xf32>
    %87 = arith.addf %85, %86 : vector<8x128xf32>
    %88 = arith.mulf %77, %48 : vector<8x128xf32>
    %89 = arith.mulf %69, %79 : vector<8x128xf32>
    %90 = arith.addf %88, %89 : vector<8x128xf32>
    %91 = math.tanh %90 : vector<8x128xf32>
    %92 = arith.mulf %87, %91 : vector<8x128xf32>
    %93 = arith.truncf %92 : vector<8x128xf32> to vector<8x128xbf16>
    %94 = arith.index_cast %c1_i32 : i32 to index
    %c0_43 = arith.constant 0 : index
    %c0_44 = arith.constant 0 : index
    %95 = vector.load %arg8[%94, %c0_43, %c0_44] : memref<12x8x128xbf16, #tpu.memory_space<vmem>>, vector<1x8x128xbf16>
    %96 = vector.shape_cast %95 : vector<1x8x128xbf16> to vector<8x128xbf16>
    %97 = vector.shape_cast %93 : vector<8x128xbf16> to vector<1x8x128xbf16>
    tpu.vector_store %arg8[%94, %c0_43, %c0_44], %97 {strides = array<i32>} : memref<12x8x128xbf16, #tpu.memory_space<vmem>>, vector<1x8x128xbf16>,
    %98 = arith.truncf %92 : vector<8x128xf32> to vector<8x128xbf16>
    %c2_i32 = arith.constant 2 : i32
    %99 = arith.index_cast %c2_i32 : i32 to index
    %c0_45 = arith.constant 0 : index
    %c0_46 = arith.constant 0 : index
    %100 = vector.load %arg11[%99, %c0_45, %c0_46] : memref<12x8x512xf32, #tpu.memory_space<vmem>>, vector<1x8x512xf32>
    %101 = vector.shape_cast %100 : vector<1x8x512xf32> to vector<8x512xf32>
    %cst_47 = arith.constant dense<0.000000e+00> : vector<8x512xf32>
    %102 = tpu.matmul %98, %12, %cst_47 {dimension_numbers = #tpu.dot_dimension_numbers<[1], [0], [0], [1], [0, 0, 1, 1], [], []>} : vector<8x128xbf16>, vector<128x512xbf16>, vector<8x512xf32> -> vector<8x512xf32>
    %103 = arith.addf %101, %102 : vector<8x512xf32>
    %104 = vector.extract_strided_slice %103 {offsets = [0, 0], sizes = [8, 128], strides = [1, 1]} : vector<8x512xf32> to vector<8x128xf32>
    %cst_48 = arith.constant 5.000000e-01 : f32
    %105 = vector.broadcast %cst_48 : f32 to vector<8x128xf32>
    %106 = arith.mulf %105, %104 : vector<8x128xf32>
    %107 = math.tanh %106 : vector<8x128xf32>
    %cst_49 = arith.constant 5.000000e-01 : f32
    %108 = vector.broadcast %cst_49 : f32 to vector<8x128xf32>
    %109 = arith.mulf %108, %107 : vector<8x128xf32>
    %cst_50 = arith.constant 5.000000e-01 : f32
    %110 = vector.broadcast %cst_50 : f32 to vector<8x128xf32>
    %111 = arith.addf %109, %110 : vector<8x128xf32>
    %112 = vector.extract_strided_slice %103 {offsets = [0, 128], sizes = [8, 128], strides = [1, 1]} : vector<8x512xf32> to vector<8x128xf32>
    %cst_51 = arith.constant 5.000000e-01 : f32
    %113 = vector.broadcast %cst_51 : f32 to vector<8x128xf32>
    %114 = arith.mulf %113, %112 : vector<8x128xf32>
    %115 = math.tanh %114 : vector<8x128xf32>
    %cst_52 = arith.constant 5.000000e-01 : f32
    %116 = vector.broadcast %cst_52 : f32 to vector<8x128xf32>
    %117 = arith.mulf %116, %115 : vector<8x128xf32>
    %cst_53 = arith.constant 5.000000e-01 : f32
    %118 = vector.broadcast %cst_53 : f32 to vector<8x128xf32>
    %119 = arith.addf %117, %118 : vector<8x128xf32>
    %120 = vector.extract_strided_slice %103 {offsets = [0, 256], sizes = [8, 128], strides = [1, 1]} : vector<8x512xf32> to vector<8x128xf32>
    %121 = math.tanh %120 : vector<8x128xf32>
    %122 = vector.extract_strided_slice %103 {offsets = [0, 384], sizes = [8, 128], strides = [1, 1]} : vector<8x512xf32> to vector<8x128xf32>
    %cst_54 = arith.constant 5.000000e-01 : f32
    %123 = vector.broadcast %cst_54 : f32 to vector<8x128xf32>
    %124 = arith.mulf %123, %122 : vector<8x128xf32>
    %125 = math.tanh %124 : vector<8x128xf32>
    %cst_55 = arith.constant 5.000000e-01 : f32
    %126 = vector.broadcast %cst_55 : f32 to vector<8x128xf32>
    %127 = arith.mulf %126, %125 : vector<8x128xf32>
    %cst_56 = arith.constant 5.000000e-01 : f32
    %128 = vector.broadcast %cst_56 : f32 to vector<8x128xf32>
    %129 = arith.addf %127, %128 : vector<8x128xf32>
    %130 = arith.mulf %119, %90 : vector<8x128xf32>
    %131 = arith.mulf %111, %121 : vector<8x128xf32>
    %132 = arith.addf %130, %131 : vector<8x128xf32>
    %133 = math.tanh %132 : vector<8x128xf32>
    %134 = arith.mulf %129, %133 : vector<8x128xf32>
    %135 = arith.truncf %134 : vector<8x128xf32> to vector<8x128xbf16>
    %136 = arith.index_cast %c2_i32 : i32 to index
    %c0_57 = arith.constant 0 : index
    %c0_58 = arith.constant 0 : index
    %137 = vector.load %arg8[%136, %c0_57, %c0_58] : memref<12x8x128xbf16, #tpu.memory_space<vmem>>, vector<1x8x128xbf16>
    %138 = vector.shape_cast %137 : vector<1x8x128xbf16> to vector<8x128xbf16>
    %139 = vector.shape_cast %135 : vector<8x128xbf16> to vector<1x8x128xbf16>
    tpu.vector_store %arg8[%136, %c0_57, %c0_58], %139 {strides = array<i32>} : memref<12x8x128xbf16, #tpu.memory_space<vmem>>, vector<1x8x128xbf16>,
    %140 = arith.truncf %134 : vector<8x128xf32> to vector<8x128xbf16>
    %c3_i32 = arith.constant 3 : i32
    %141 = arith.index_cast %c3_i32 : i32 to index
    %c0_59 = arith.constant 0 : index
    %c0_60 = arith.constant 0 : index
    %142 = vector.load %arg11[%141, %c0_59, %c0_60] : memref<12x8x512xf32, #tpu.memory_space<vmem>>, vector<1x8x512xf32>
    %143 = vector.shape_cast %142 : vector<1x8x512xf32> to vector<8x512xf32>
    %cst_61 = arith.constant dense<0.000000e+00> : vector<8x512xf32>
    %144 = tpu.matmul %140, %12, %cst_61 {dimension_numbers = #tpu.dot_dimension_numbers<[1], [0], [0], [1], [0, 0, 1, 1], [], []>} : vector<8x128xbf16>, vector<128x512xbf16>, vector<8x512xf32> -> vector<8x512xf32>
    %145 = arith.addf %143, %144 : vector<8x512xf32>
    %146 = vector.extract_strided_slice %145 {offsets = [0, 0], sizes = [8, 128], strides = [1, 1]} : vector<8x512xf32> to vector<8x128xf32>
    %cst_62 = arith.constant 5.000000e-01 : f32
    %147 = vector.broadcast %cst_62 : f32 to vector<8x128xf32>
    %148 = arith.mulf %147, %146 : vector<8x128xf32>
    %149 = math.tanh %148 : vector<8x128xf32>
    %cst_63 = arith.constant 5.000000e-01 : f32
    %150 = vector.broadcast %cst_63 : f32 to vector<8x128xf32>
    %151 = arith.mulf %150, %149 : vector<8x128xf32>
    %cst_64 = arith.constant 5.000000e-01 : f32
    %152 = vector.broadcast %cst_64 : f32 to vector<8x128xf32>
    %153 = arith.addf %151, %152 : vector<8x128xf32>
    %154 = vector.extract_strided_slice %145 {offsets = [0, 128], sizes = [8, 128], strides = [1, 1]} : vector<8x512xf32> to vector<8x128xf32>
    %cst_65 = arith.constant 5.000000e-01 : f32
    %155 = vector.broadcast %cst_65 : f32 to vector<8x128xf32>
    %156 = arith.mulf %155, %154 : vector<8x128xf32>
    %157 = math.tanh %156 : vector<8x128xf32>
    %cst_66 = arith.constant 5.000000e-01 : f32
    %158 = vector.broadcast %cst_66 : f32 to vector<8x128xf32>
    %159 = arith.mulf %158, %157 : vector<8x128xf32>
    %cst_67 = arith.constant 5.000000e-01 : f32
    %160 = vector.broadcast %cst_67 : f32 to vector<8x128xf32>
    %161 = arith.addf %159, %160 : vector<8x128xf32>
    %162 = vector.extract_strided_slice %145 {offsets = [0, 256], sizes = [8, 128], strides = [1, 1]} : vector<8x512xf32> to vector<8x128xf32>
    %163 = math.tanh %162 : vector<8x128xf32>
    %164 = vector.extract_strided_slice %145 {offsets = [0, 384], sizes = [8, 128], strides = [1, 1]} : vector<8x512xf32> to vector<8x128xf32>
    %cst_68 = arith.constant 5.000000e-01 : f32
    %165 = vector.broadcast %cst_68 : f32 to vector<8x128xf32>
    %166 = arith.mulf %165, %164 : vector<8x128xf32>
    %167 = math.tanh %166 : vector<8x128xf32>
    %cst_69 = arith.constant 5.000000e-01 : f32
    %168 = vector.broadcast %cst_69 : f32 to vector<8x128xf32>
    %169 = arith.mulf %168, %167 : vector<8x128xf32>
    %cst_70 = arith.constant 5.000000e-01 : f32
    %170 = vector.broadcast %cst_70 : f32 to vector<8x128xf32>
    %171 = arith.addf %169, %170 : vector<8x128xf32>
    %172 = arith.mulf %161, %132 : vector<8x128xf32>
    %173 = arith.mulf %153, %163 : vector<8x128xf32>
    %174 = arith.addf %172, %173 : vector<8x128xf32>
    %175 = math.tanh %174 : vector<8x128xf32>
    %176 = arith.mulf %171, %175 : vector<8x128xf32>
    %177 = arith.truncf %176 : vector<8x128xf32> to vector<8x128xbf16>
    %178 = arith.index_cast %c3_i32 : i32 to index
    %c0_71 = arith.constant 0 : index
    %c0_72 = arith.constant 0 : index
    %179 = vector.load %arg8[%178, %c0_71, %c0_72] : memref<12x8x128xbf16, #tpu.memory_space<vmem>>, vector<1x8x128xbf16>
    %180 = vector.shape_cast %179 : vector<1x8x128xbf16> to vector<8x128xbf16>
    %181 = vector.shape_cast %177 : vector<8x128xbf16> to vector<1x8x128xbf16>
    tpu.vector_store %arg8[%178, %c0_71, %c0_72], %181 {strides = array<i32>} : memref<12x8x128xbf16, #tpu.memory_space<vmem>>, vector<1x8x128xbf16>,
    %182 = arith.truncf %176 : vector<8x128xf32> to vector<8x128xbf16>
    %c4_i32 = arith.constant 4 : i32
    %183 = arith.index_cast %c4_i32 : i32 to index
    %c0_73 = arith.constant 0 : index
    %c0_74 = arith.constant 0 : index
    %184 = vector.load %arg11[%183, %c0_73, %c0_74] : memref<12x8x512xf32, #tpu.memory_space<vmem>>, vector<1x8x512xf32>
    %185 = vector.shape_cast %184 : vector<1x8x512xf32> to vector<8x512xf32>
    %cst_75 = arith.constant dense<0.000000e+00> : vector<8x512xf32>
    %186 = tpu.matmul %182, %12, %cst_75 {dimension_numbers = #tpu.dot_dimension_numbers<[1], [0], [0], [1], [0, 0, 1, 1], [], []>} : vector<8x128xbf16>, vector<128x512xbf16>, vector<8x512xf32> -> vector<8x512xf32>
    %187 = arith.addf %185, %186 : vector<8x512xf32>
    %188 = vector.extract_strided_slice %187 {offsets = [0, 0], sizes = [8, 128], strides = [1, 1]} : vector<8x512xf32> to vector<8x128xf32>
    %cst_76 = arith.constant 5.000000e-01 : f32
    %189 = vector.broadcast %cst_76 : f32 to vector<8x128xf32>
    %190 = arith.mulf %189, %188 : vector<8x128xf32>
    %191 = math.tanh %190 : vector<8x128xf32>
    %cst_77 = arith.constant 5.000000e-01 : f32
    %192 = vector.broadcast %cst_77 : f32 to vector<8x128xf32>
    %193 = arith.mulf %192, %191 : vector<8x128xf32>
    %cst_78 = arith.constant 5.000000e-01 : f32
    %194 = vector.broadcast %cst_78 : f32 to vector<8x128xf32>
    %195 = arith.addf %193, %194 : vector<8x128xf32>
    %196 = vector.extract_strided_slice %187 {offsets = [0, 128], sizes = [8, 128], strides = [1, 1]} : vector<8x512xf32> to vector<8x128xf32>
    %cst_79 = arith.constant 5.000000e-01 : f32
    %197 = vector.broadcast %cst_79 : f32 to vector<8x128xf32>
    %198 = arith.mulf %197, %196 : vector<8x128xf32>
    %199 = math.tanh %198 : vector<8x128xf32>
    %cst_80 = arith.constant 5.000000e-01 : f32
    %200 = vector.broadcast %cst_80 : f32 to vector<8x128xf32>
    %201 = arith.mulf %200, %199 : vector<8x128xf32>
    %cst_81 = arith.constant 5.000000e-01 : f32
    %202 = vector.broadcast %cst_81 : f32 to vector<8x128xf32>
    %203 = arith.addf %201, %202 : vector<8x128xf32>
    %204 = vector.extract_strided_slice %187 {offsets = [0, 256], sizes = [8, 128], strides = [1, 1]} : vector<8x512xf32> to vector<8x128xf32>
    %205 = math.tanh %204 : vector<8x128xf32>
    %206 = vector.extract_strided_slice %187 {offsets = [0, 384], sizes = [8, 128], strides = [1, 1]} : vector<8x512xf32> to vector<8x128xf32>
    %cst_82 = arith.constant 5.000000e-01 : f32
    %207 = vector.broadcast %cst_82 : f32 to vector<8x128xf32>
    %208 = arith.mulf %207, %206 : vector<8x128xf32>
    %209 = math.tanh %208 : vector<8x128xf32>
    %cst_83 = arith.constant 5.000000e-01 : f32
    %210 = vector.broadcast %cst_83 : f32 to vector<8x128xf32>
    %211 = arith.mulf %210, %209 : vector<8x128xf32>
    %cst_84 = arith.constant 5.000000e-01 : f32
    %212 = vector.broadcast %cst_84 : f32 to vector<8x128xf32>
    %213 = arith.addf %211, %212 : vector<8x128xf32>
    %214 = arith.mulf %203, %174 : vector<8x128xf32>
    %215 = arith.mulf %195, %205 : vector<8x128xf32>
    %216 = arith.addf %214, %215 : vector<8x128xf32>
    %217 = math.tanh %216 : vector<8x128xf32>
    %218 = arith.mulf %213, %217 : vector<8x128xf32>
    %219 = arith.truncf %218 : vector<8x128xf32> to vector<8x128xbf16>
    %220 = arith.index_cast %c4_i32 : i32 to index
    %c0_85 = arith.constant 0 : index
    %c0_86 = arith.constant 0 : index
    %221 = vector.load %arg8[%220, %c0_85, %c0_86] : memref<12x8x128xbf16, #tpu.memory_space<vmem>>, vector<1x8x128xbf16>
    %222 = vector.shape_cast %221 : vector<1x8x128xbf16> to vector<8x128xbf16>
    %223 = vector.shape_cast %219 : vector<8x128xbf16> to vector<1x8x128xbf16>
    tpu.vector_store %arg8[%220, %c0_85, %c0_86], %223 {strides = array<i32>} : memref<12x8x128xbf16, #tpu.memory_space<vmem>>, vector<1x8x128xbf16>,
    %224 = arith.truncf %218 : vector<8x128xf32> to vector<8x128xbf16>
    %c5_i32 = arith.constant 5 : i32
    %225 = arith.index_cast %c5_i32 : i32 to index
    %c0_87 = arith.constant 0 : index
    %c0_88 = arith.constant 0 : index
    %226 = vector.load %arg11[%225, %c0_87, %c0_88] : memref<12x8x512xf32, #tpu.memory_space<vmem>>, vector<1x8x512xf32>
    %227 = vector.shape_cast %226 : vector<1x8x512xf32> to vector<8x512xf32>
    %cst_89 = arith.constant dense<0.000000e+00> : vector<8x512xf32>
    %228 = tpu.matmul %224, %12, %cst_89 {dimension_numbers = #tpu.dot_dimension_numbers<[1], [0], [0], [1], [0, 0, 1, 1], [], []>} : vector<8x128xbf16>, vector<128x512xbf16>, vector<8x512xf32> -> vector<8x512xf32>
    %229 = arith.addf %227, %228 : vector<8x512xf32>
    %230 = vector.extract_strided_slice %229 {offsets = [0, 0], sizes = [8, 128], strides = [1, 1]} : vector<8x512xf32> to vector<8x128xf32>
    %cst_90 = arith.constant 5.000000e-01 : f32
    %231 = vector.broadcast %cst_90 : f32 to vector<8x128xf32>
    %232 = arith.mulf %231, %230 : vector<8x128xf32>
    %233 = math.tanh %232 : vector<8x128xf32>
    %cst_91 = arith.constant 5.000000e-01 : f32
    %234 = vector.broadcast %cst_91 : f32 to vector<8x128xf32>
    %235 = arith.mulf %234, %233 : vector<8x128xf32>
    %cst_92 = arith.constant 5.000000e-01 : f32
    %236 = vector.broadcast %cst_92 : f32 to vector<8x128xf32>
    %237 = arith.addf %235, %236 : vector<8x128xf32>
    %238 = vector.extract_strided_slice %229 {offsets = [0, 128], sizes = [8, 128], strides = [1, 1]} : vector<8x512xf32> to vector<8x128xf32>
    %cst_93 = arith.constant 5.000000e-01 : f32
    %239 = vector.broadcast %cst_93 : f32 to vector<8x128xf32>
    %240 = arith.mulf %239, %238 : vector<8x128xf32>
    %241 = math.tanh %240 : vector<8x128xf32>
    %cst_94 = arith.constant 5.000000e-01 : f32
    %242 = vector.broadcast %cst_94 : f32 to vector<8x128xf32>
    %243 = arith.mulf %242, %241 : vector<8x128xf32>
    %cst_95 = arith.constant 5.000000e-01 : f32
    %244 = vector.broadcast %cst_95 : f32 to vector<8x128xf32>
    %245 = arith.addf %243, %244 : vector<8x128xf32>
    %246 = vector.extract_strided_slice %229 {offsets = [0, 256], sizes = [8, 128], strides = [1, 1]} : vector<8x512xf32> to vector<8x128xf32>
    %247 = math.tanh %246 : vector<8x128xf32>
    %248 = vector.extract_strided_slice %229 {offsets = [0, 384], sizes = [8, 128], strides = [1, 1]} : vector<8x512xf32> to vector<8x128xf32>
    %cst_96 = arith.constant 5.000000e-01 : f32
    %249 = vector.broadcast %cst_96 : f32 to vector<8x128xf32>
    %250 = arith.mulf %249, %248 : vector<8x128xf32>
    %251 = math.tanh %250 : vector<8x128xf32>
    %cst_97 = arith.constant 5.000000e-01 : f32
    %252 = vector.broadcast %cst_97 : f32 to vector<8x128xf32>
    %253 = arith.mulf %252, %251 : vector<8x128xf32>
    %cst_98 = arith.constant 5.000000e-01 : f32
    %254 = vector.broadcast %cst_98 : f32 to vector<8x128xf32>
    %255 = arith.addf %253, %254 : vector<8x128xf32>
    %256 = arith.mulf %245, %216 : vector<8x128xf32>
    %257 = arith.mulf %237, %247 : vector<8x128xf32>
    %258 = arith.addf %256, %257 : vector<8x128xf32>
    %259 = math.tanh %258 : vector<8x128xf32>
    %260 = arith.mulf %255, %259 : vector<8x128xf32>
    %261 = arith.truncf %260 : vector<8x128xf32> to vector<8x128xbf16>
    %262 = arith.index_cast %c5_i32 : i32 to index
    %c0_99 = arith.constant 0 : index
    %c0_100 = arith.constant 0 : index
    %263 = vector.load %arg8[%262, %c0_99, %c0_100] : memref<12x8x128xbf16, #tpu.memory_space<vmem>>, vector<1x8x128xbf16>
    %264 = vector.shape_cast %263 : vector<1x8x128xbf16> to vector<8x128xbf16>
    %265 = vector.shape_cast %261 : vector<8x128xbf16> to vector<1x8x128xbf16>
    tpu.vector_store %arg8[%262, %c0_99, %c0_100], %265 {strides = array<i32>} : memref<12x8x128xbf16, #tpu.memory_space<vmem>>, vector<1x8x128xbf16>,
    %266 = arith.truncf %260 : vector<8x128xf32> to vector<8x128xbf16>
    %c6_i32 = arith.constant 6 : i32
    %267 = arith.index_cast %c6_i32 : i32 to index
    %c0_101 = arith.constant 0 : index
    %c0_102 = arith.constant 0 : index
    %268 = vector.load %arg11[%267, %c0_101, %c0_102] : memref<12x8x512xf32, #tpu.memory_space<vmem>>, vector<1x8x512xf32>
    %269 = vector.shape_cast %268 : vector<1x8x512xf32> to vector<8x512xf32>
    %cst_103 = arith.constant dense<0.000000e+00> : vector<8x512xf32>
    %270 = tpu.matmul %266, %12, %cst_103 {dimension_numbers = #tpu.dot_dimension_numbers<[1], [0], [0], [1], [0, 0, 1, 1], [], []>} : vector<8x128xbf16>, vector<128x512xbf16>, vector<8x512xf32> -> vector<8x512xf32>
    %271 = arith.addf %269, %270 : vector<8x512xf32>
    %272 = vector.extract_strided_slice %271 {offsets = [0, 0], sizes = [8, 128], strides = [1, 1]} : vector<8x512xf32> to vector<8x128xf32>
    %cst_104 = arith.constant 5.000000e-01 : f32
    %273 = vector.broadcast %cst_104 : f32 to vector<8x128xf32>
    %274 = arith.mulf %273, %272 : vector<8x128xf32>
    %275 = math.tanh %274 : vector<8x128xf32>
    %cst_105 = arith.constant 5.000000e-01 : f32
    %276 = vector.broadcast %cst_105 : f32 to vector<8x128xf32>
    %277 = arith.mulf %276, %275 : vector<8x128xf32>
    %cst_106 = arith.constant 5.000000e-01 : f32
    %278 = vector.broadcast %cst_106 : f32 to vector<8x128xf32>
    %279 = arith.addf %277, %278 : vector<8x128xf32>
    %280 = vector.extract_strided_slice %271 {offsets = [0, 128], sizes = [8, 128], strides = [1, 1]} : vector<8x512xf32> to vector<8x128xf32>
    %cst_107 = arith.constant 5.000000e-01 : f32
    %281 = vector.broadcast %cst_107 : f32 to vector<8x128xf32>
    %282 = arith.mulf %281, %280 : vector<8x128xf32>
    %283 = math.tanh %282 : vector<8x128xf32>
    %cst_108 = arith.constant 5.000000e-01 : f32
    %284 = vector.broadcast %cst_108 : f32 to vector<8x128xf32>
    %285 = arith.mulf %284, %283 : vector<8x128xf32>
    %cst_109 = arith.constant 5.000000e-01 : f32
    %286 = vector.broadcast %cst_109 : f32 to vector<8x128xf32>
    %287 = arith.addf %285, %286 : vector<8x128xf32>
    %288 = vector.extract_strided_slice %271 {offsets = [0, 256], sizes = [8, 128], strides = [1, 1]} : vector<8x512xf32> to vector<8x128xf32>
    %289 = math.tanh %288 : vector<8x128xf32>
    %290 = vector.extract_strided_slice %271 {offsets = [0, 384], sizes = [8, 128], strides = [1, 1]} : vector<8x512xf32> to vector<8x128xf32>
    %cst_110 = arith.constant 5.000000e-01 : f32
    %291 = vector.broadcast %cst_110 : f32 to vector<8x128xf32>
    %292 = arith.mulf %291, %290 : vector<8x128xf32>
    %293 = math.tanh %292 : vector<8x128xf32>
    %cst_111 = arith.constant 5.000000e-01 : f32
    %294 = vector.broadcast %cst_111 : f32 to vector<8x128xf32>
    %295 = arith.mulf %294, %293 : vector<8x128xf32>
    %cst_112 = arith.constant 5.000000e-01 : f32
    %296 = vector.broadcast %cst_112 : f32 to vector<8x128xf32>
    %297 = arith.addf %295, %296 : vector<8x128xf32>
    %298 = arith.mulf %287, %258 : vector<8x128xf32>
    %299 = arith.mulf %279, %289 : vector<8x128xf32>
    %300 = arith.addf %298, %299 : vector<8x128xf32>
    %301 = math.tanh %300 : vector<8x128xf32>
    %302 = arith.mulf %297, %301 : vector<8x128xf32>
    %303 = arith.truncf %302 : vector<8x128xf32> to vector<8x128xbf16>
    %304 = arith.index_cast %c6_i32 : i32 to index
    %c0_113 = arith.constant 0 : index
    %c0_114 = arith.constant 0 : index
    %305 = vector.load %arg8[%304, %c0_113, %c0_114] : memref<12x8x128xbf16, #tpu.memory_space<vmem>>, vector<1x8x128xbf16>
    %306 = vector.shape_cast %305 : vector<1x8x128xbf16> to vector<8x128xbf16>
    %307 = vector.shape_cast %303 : vector<8x128xbf16> to vector<1x8x128xbf16>
    tpu.vector_store %arg8[%304, %c0_113, %c0_114], %307 {strides = array<i32>} : memref<12x8x128xbf16, #tpu.memory_space<vmem>>, vector<1x8x128xbf16>,
    %308 = arith.truncf %302 : vector<8x128xf32> to vector<8x128xbf16>
    %c7_i32 = arith.constant 7 : i32
    %309 = arith.index_cast %c7_i32 : i32 to index
    %c0_115 = arith.constant 0 : index
    %c0_116 = arith.constant 0 : index
    %310 = vector.load %arg11[%309, %c0_115, %c0_116] : memref<12x8x512xf32, #tpu.memory_space<vmem>>, vector<1x8x512xf32>
    %311 = vector.shape_cast %310 : vector<1x8x512xf32> to vector<8x512xf32>
    %cst_117 = arith.constant dense<0.000000e+00> : vector<8x512xf32>
    %312 = tpu.matmul %308, %12, %cst_117 {dimension_numbers = #tpu.dot_dimension_numbers<[1], [0], [0], [1], [0, 0, 1, 1], [], []>} : vector<8x128xbf16>, vector<128x512xbf16>, vector<8x512xf32> -> vector<8x512xf32>
    %313 = arith.addf %311, %312 : vector<8x512xf32>
    %314 = vector.extract_strided_slice %313 {offsets = [0, 0], sizes = [8, 128], strides = [1, 1]} : vector<8x512xf32> to vector<8x128xf32>
    %cst_118 = arith.constant 5.000000e-01 : f32
    %315 = vector.broadcast %cst_118 : f32 to vector<8x128xf32>
    %316 = arith.mulf %315, %314 : vector<8x128xf32>
    %317 = math.tanh %316 : vector<8x128xf32>
    %cst_119 = arith.constant 5.000000e-01 : f32
    %318 = vector.broadcast %cst_119 : f32 to vector<8x128xf32>
    %319 = arith.mulf %318, %317 : vector<8x128xf32>
    %cst_120 = arith.constant 5.000000e-01 : f32
    %320 = vector.broadcast %cst_120 : f32 to vector<8x128xf32>
    %321 = arith.addf %319, %320 : vector<8x128xf32>
    %322 = vector.extract_strided_slice %313 {offsets = [0, 128], sizes = [8, 128], strides = [1, 1]} : vector<8x512xf32> to vector<8x128xf32>
    %cst_121 = arith.constant 5.000000e-01 : f32
    %323 = vector.broadcast %cst_121 : f32 to vector<8x128xf32>
    %324 = arith.mulf %323, %322 : vector<8x128xf32>
    %325 = math.tanh %324 : vector<8x128xf32>
    %cst_122 = arith.constant 5.000000e-01 : f32
    %326 = vector.broadcast %cst_122 : f32 to vector<8x128xf32>
    %327 = arith.mulf %326, %325 : vector<8x128xf32>
    %cst_123 = arith.constant 5.000000e-01 : f32
    %328 = vector.broadcast %cst_123 : f32 to vector<8x128xf32>
    %329 = arith.addf %327, %328 : vector<8x128xf32>
    %330 = vector.extract_strided_slice %313 {offsets = [0, 256], sizes = [8, 128], strides = [1, 1]} : vector<8x512xf32> to vector<8x128xf32>
    %331 = math.tanh %330 : vector<8x128xf32>
    %332 = vector.extract_strided_slice %313 {offsets = [0, 384], sizes = [8, 128], strides = [1, 1]} : vector<8x512xf32> to vector<8x128xf32>
    %cst_124 = arith.constant 5.000000e-01 : f32
    %333 = vector.broadcast %cst_124 : f32 to vector<8x128xf32>
    %334 = arith.mulf %333, %332 : vector<8x128xf32>
    %335 = math.tanh %334 : vector<8x128xf32>
    %cst_125 = arith.constant 5.000000e-01 : f32
    %336 = vector.broadcast %cst_125 : f32 to vector<8x128xf32>
    %337 = arith.mulf %336, %335 : vector<8x128xf32>
    %cst_126 = arith.constant 5.000000e-01 : f32
    %338 = vector.broadcast %cst_126 : f32 to vector<8x128xf32>
    %339 = arith.addf %337, %338 : vector<8x128xf32>
    %340 = arith.mulf %329, %300 : vector<8x128xf32>
    %341 = arith.mulf %321, %331 : vector<8x128xf32>
    %342 = arith.addf %340, %341 : vector<8x128xf32>
    %343 = math.tanh %342 : vector<8x128xf32>
    %344 = arith.mulf %339, %343 : vector<8x128xf32>
    %345 = arith.truncf %344 : vector<8x128xf32> to vector<8x128xbf16>
    %346 = arith.index_cast %c7_i32 : i32 to index
    %c0_127 = arith.constant 0 : index
    %c0_128 = arith.constant 0 : index
    %347 = vector.load %arg8[%346, %c0_127, %c0_128] : memref<12x8x128xbf16, #tpu.memory_space<vmem>>, vector<1x8x128xbf16>
    %348 = vector.shape_cast %347 : vector<1x8x128xbf16> to vector<8x128xbf16>
    %349 = vector.shape_cast %345 : vector<8x128xbf16> to vector<1x8x128xbf16>
    tpu.vector_store %arg8[%346, %c0_127, %c0_128], %349 {strides = array<i32>} : memref<12x8x128xbf16, #tpu.memory_space<vmem>>, vector<1x8x128xbf16>,
    %350 = arith.truncf %344 : vector<8x128xf32> to vector<8x128xbf16>
    %c8_i32 = arith.constant 8 : i32
    %351 = arith.index_cast %c8_i32 : i32 to index
    %c0_129 = arith.constant 0 : index
    %c0_130 = arith.constant 0 : index
    %352 = vector.load %arg11[%351, %c0_129, %c0_130] : memref<12x8x512xf32, #tpu.memory_space<vmem>>, vector<1x8x512xf32>
    %353 = vector.shape_cast %352 : vector<1x8x512xf32> to vector<8x512xf32>
    %cst_131 = arith.constant dense<0.000000e+00> : vector<8x512xf32>
    %354 = tpu.matmul %350, %12, %cst_131 {dimension_numbers = #tpu.dot_dimension_numbers<[1], [0], [0], [1], [0, 0, 1, 1], [], []>} : vector<8x128xbf16>, vector<128x512xbf16>, vector<8x512xf32> -> vector<8x512xf32>
    %355 = arith.addf %353, %354 : vector<8x512xf32>
    %356 = vector.extract_strided_slice %355 {offsets = [0, 0], sizes = [8, 128], strides = [1, 1]} : vector<8x512xf32> to vector<8x128xf32>
    %cst_132 = arith.constant 5.000000e-01 : f32
    %357 = vector.broadcast %cst_132 : f32 to vector<8x128xf32>
    %358 = arith.mulf %357, %356 : vector<8x128xf32>
    %359 = math.tanh %358 : vector<8x128xf32>
    %cst_133 = arith.constant 5.000000e-01 : f32
    %360 = vector.broadcast %cst_133 : f32 to vector<8x128xf32>
    %361 = arith.mulf %360, %359 : vector<8x128xf32>
    %cst_134 = arith.constant 5.000000e-01 : f32
    %362 = vector.broadcast %cst_134 : f32 to vector<8x128xf32>
    %363 = arith.addf %361, %362 : vector<8x128xf32>
    %364 = vector.extract_strided_slice %355 {offsets = [0, 128], sizes = [8, 128], strides = [1, 1]} : vector<8x512xf32> to vector<8x128xf32>
    %cst_135 = arith.constant 5.000000e-01 : f32
    %365 = vector.broadcast %cst_135 : f32 to vector<8x128xf32>
    %366 = arith.mulf %365, %364 : vector<8x128xf32>
    %367 = math.tanh %366 : vector<8x128xf32>
    %cst_136 = arith.constant 5.000000e-01 : f32
    %368 = vector.broadcast %cst_136 : f32 to vector<8x128xf32>
    %369 = arith.mulf %368, %367 : vector<8x128xf32>
    %cst_137 = arith.constant 5.000000e-01 : f32
    %370 = vector.broadcast %cst_137 : f32 to vector<8x128xf32>
    %371 = arith.addf %369, %370 : vector<8x128xf32>
    %372 = vector.extract_strided_slice %355 {offsets = [0, 256], sizes = [8, 128], strides = [1, 1]} : vector<8x512xf32> to vector<8x128xf32>
    %373 = math.tanh %372 : vector<8x128xf32>
    %374 = vector.extract_strided_slice %355 {offsets = [0, 384], sizes = [8, 128], strides = [1, 1]} : vector<8x512xf32> to vector<8x128xf32>
    %cst_138 = arith.constant 5.000000e-01 : f32
    %375 = vector.broadcast %cst_138 : f32 to vector<8x128xf32>
    %376 = arith.mulf %375, %374 : vector<8x128xf32>
    %377 = math.tanh %376 : vector<8x128xf32>
    %cst_139 = arith.constant 5.000000e-01 : f32
    %378 = vector.broadcast %cst_139 : f32 to vector<8x128xf32>
    %379 = arith.mulf %378, %377 : vector<8x128xf32>
    %cst_140 = arith.constant 5.000000e-01 : f32
    %380 = vector.broadcast %cst_140 : f32 to vector<8x128xf32>
    %381 = arith.addf %379, %380 : vector<8x128xf32>
    %382 = arith.mulf %371, %342 : vector<8x128xf32>
    %383 = arith.mulf %363, %373 : vector<8x128xf32>
    %384 = arith.addf %382, %383 : vector<8x128xf32>
    %385 = math.tanh %384 : vector<8x128xf32>
    %386 = arith.mulf %381, %385 : vector<8x128xf32>
    %387 = arith.truncf %386 : vector<8x128xf32> to vector<8x128xbf16>
    %388 = arith.index_cast %c8_i32 : i32 to index
    %c0_141 = arith.constant 0 : index
    %c0_142 = arith.constant 0 : index
    %389 = vector.load %arg8[%388, %c0_141, %c0_142] : memref<12x8x128xbf16, #tpu.memory_space<vmem>>, vector<1x8x128xbf16>
    %390 = vector.shape_cast %389 : vector<1x8x128xbf16> to vector<8x128xbf16>
    %391 = vector.shape_cast %387 : vector<8x128xbf16> to vector<1x8x128xbf16>
    tpu.vector_store %arg8[%388, %c0_141, %c0_142], %391 {strides = array<i32>} : memref<12x8x128xbf16, #tpu.memory_space<vmem>>, vector<1x8x128xbf16>,
    %392 = arith.truncf %386 : vector<8x128xf32> to vector<8x128xbf16>
    %c9_i32 = arith.constant 9 : i32
    %393 = arith.index_cast %c9_i32 : i32 to index
    %c0_143 = arith.constant 0 : index
    %c0_144 = arith.constant 0 : index
    %394 = vector.load %arg11[%393, %c0_143, %c0_144] : memref<12x8x512xf32, #tpu.memory_space<vmem>>, vector<1x8x512xf32>
    %395 = vector.shape_cast %394 : vector<1x8x512xf32> to vector<8x512xf32>
    %cst_145 = arith.constant dense<0.000000e+00> : vector<8x512xf32>
    %396 = tpu.matmul %392, %12, %cst_145 {dimension_numbers = #tpu.dot_dimension_numbers<[1], [0], [0], [1], [0, 0, 1, 1], [], []>} : vector<8x128xbf16>, vector<128x512xbf16>, vector<8x512xf32> -> vector<8x512xf32>
    %397 = arith.addf %395, %396 : vector<8x512xf32>
    %398 = vector.extract_strided_slice %397 {offsets = [0, 0], sizes = [8, 128], strides = [1, 1]} : vector<8x512xf32> to vector<8x128xf32>
    %cst_146 = arith.constant 5.000000e-01 : f32
    %399 = vector.broadcast %cst_146 : f32 to vector<8x128xf32>
    %400 = arith.mulf %399, %398 : vector<8x128xf32>
    %401 = math.tanh %400 : vector<8x128xf32>
    %cst_147 = arith.constant 5.000000e-01 : f32
    %402 = vector.broadcast %cst_147 : f32 to vector<8x128xf32>
    %403 = arith.mulf %402, %401 : vector<8x128xf32>
    %cst_148 = arith.constant 5.000000e-01 : f32
    %404 = vector.broadcast %cst_148 : f32 to vector<8x128xf32>
    %405 = arith.addf %403, %404 : vector<8x128xf32>
    %406 = vector.extract_strided_slice %397 {offsets = [0, 128], sizes = [8, 128], strides = [1, 1]} : vector<8x512xf32> to vector<8x128xf32>
    %cst_149 = arith.constant 5.000000e-01 : f32
    %407 = vector.broadcast %cst_149 : f32 to vector<8x128xf32>
    %408 = arith.mulf %407, %406 : vector<8x128xf32>
    %409 = math.tanh %408 : vector<8x128xf32>
    %cst_150 = arith.constant 5.000000e-01 : f32
    %410 = vector.broadcast %cst_150 : f32 to vector<8x128xf32>
    %411 = arith.mulf %410, %409 : vector<8x128xf32>
    %cst_151 = arith.constant 5.000000e-01 : f32
    %412 = vector.broadcast %cst_151 : f32 to vector<8x128xf32>
    %413 = arith.addf %411, %412 : vector<8x128xf32>
    %414 = vector.extract_strided_slice %397 {offsets = [0, 256], sizes = [8, 128], strides = [1, 1]} : vector<8x512xf32> to vector<8x128xf32>
    %415 = math.tanh %414 : vector<8x128xf32>
    %416 = vector.extract_strided_slice %397 {offsets = [0, 384], sizes = [8, 128], strides = [1, 1]} : vector<8x512xf32> to vector<8x128xf32>
    %cst_152 = arith.constant 5.000000e-01 : f32
    %417 = vector.broadcast %cst_152 : f32 to vector<8x128xf32>
    %418 = arith.mulf %417, %416 : vector<8x128xf32>
    %419 = math.tanh %418 : vector<8x128xf32>
    %cst_153 = arith.constant 5.000000e-01 : f32
    %420 = vector.broadcast %cst_153 : f32 to vector<8x128xf32>
    %421 = arith.mulf %420, %419 : vector<8x128xf32>
    %cst_154 = arith.constant 5.000000e-01 : f32
    %422 = vector.broadcast %cst_154 : f32 to vector<8x128xf32>
    %423 = arith.addf %421, %422 : vector<8x128xf32>
    %424 = arith.mulf %413, %384 : vector<8x128xf32>
    %425 = arith.mulf %405, %415 : vector<8x128xf32>
    %426 = arith.addf %424, %425 : vector<8x128xf32>
    %427 = math.tanh %426 : vector<8x128xf32>
    %428 = arith.mulf %423, %427 : vector<8x128xf32>
    %429 = arith.truncf %428 : vector<8x128xf32> to vector<8x128xbf16>
    %430 = arith.index_cast %c9_i32 : i32 to index
    %c0_155 = arith.constant 0 : index
    %c0_156 = arith.constant 0 : index
    %431 = vector.load %arg8[%430, %c0_155, %c0_156] : memref<12x8x128xbf16, #tpu.memory_space<vmem>>, vector<1x8x128xbf16>
    %432 = vector.shape_cast %431 : vector<1x8x128xbf16> to vector<8x128xbf16>
    %433 = vector.shape_cast %429 : vector<8x128xbf16> to vector<1x8x128xbf16>
    tpu.vector_store %arg8[%430, %c0_155, %c0_156], %433 {strides = array<i32>} : memref<12x8x128xbf16, #tpu.memory_space<vmem>>, vector<1x8x128xbf16>,
    %434 = arith.truncf %428 : vector<8x128xf32> to vector<8x128xbf16>
    %c10_i32 = arith.constant 10 : i32
    %435 = arith.index_cast %c10_i32 : i32 to index
    %c0_157 = arith.constant 0 : index
    %c0_158 = arith.constant 0 : index
    %436 = vector.load %arg11[%435, %c0_157, %c0_158] : memref<12x8x512xf32, #tpu.memory_space<vmem>>, vector<1x8x512xf32>
    %437 = vector.shape_cast %436 : vector<1x8x512xf32> to vector<8x512xf32>
    %cst_159 = arith.constant dense<0.000000e+00> : vector<8x512xf32>
    %438 = tpu.matmul %434, %12, %cst_159 {dimension_numbers = #tpu.dot_dimension_numbers<[1], [0], [0], [1], [0, 0, 1, 1], [], []>} : vector<8x128xbf16>, vector<128x512xbf16>, vector<8x512xf32> -> vector<8x512xf32>
    %439 = arith.addf %437, %438 : vector<8x512xf32>
    %440 = vector.extract_strided_slice %439 {offsets = [0, 0], sizes = [8, 128], strides = [1, 1]} : vector<8x512xf32> to vector<8x128xf32>
    %cst_160 = arith.constant 5.000000e-01 : f32
    %441 = vector.broadcast %cst_160 : f32 to vector<8x128xf32>
    %442 = arith.mulf %441, %440 : vector<8x128xf32>
    %443 = math.tanh %442 : vector<8x128xf32>
    %cst_161 = arith.constant 5.000000e-01 : f32
    %444 = vector.broadcast %cst_161 : f32 to vector<8x128xf32>
    %445 = arith.mulf %444, %443 : vector<8x128xf32>
    %cst_162 = arith.constant 5.000000e-01 : f32
    %446 = vector.broadcast %cst_162 : f32 to vector<8x128xf32>
    %447 = arith.addf %445, %446 : vector<8x128xf32>
    %448 = vector.extract_strided_slice %439 {offsets = [0, 128], sizes = [8, 128], strides = [1, 1]} : vector<8x512xf32> to vector<8x128xf32>
    %cst_163 = arith.constant 5.000000e-01 : f32
    %449 = vector.broadcast %cst_163 : f32 to vector<8x128xf32>
    %450 = arith.mulf %449, %448 : vector<8x128xf32>
    %451 = math.tanh %450 : vector<8x128xf32>
    %cst_164 = arith.constant 5.000000e-01 : f32
    %452 = vector.broadcast %cst_164 : f32 to vector<8x128xf32>
    %453 = arith.mulf %452, %451 : vector<8x128xf32>
    %cst_165 = arith.constant 5.000000e-01 : f32
    %454 = vector.broadcast %cst_165 : f32 to vector<8x128xf32>
    %455 = arith.addf %453, %454 : vector<8x128xf32>
    %456 = vector.extract_strided_slice %439 {offsets = [0, 256], sizes = [8, 128], strides = [1, 1]} : vector<8x512xf32> to vector<8x128xf32>
    %457 = math.tanh %456 : vector<8x128xf32>
    %458 = vector.extract_strided_slice %439 {offsets = [0, 384], sizes = [8, 128], strides = [1, 1]} : vector<8x512xf32> to vector<8x128xf32>
    %cst_166 = arith.constant 5.000000e-01 : f32
    %459 = vector.broadcast %cst_166 : f32 to vector<8x128xf32>
    %460 = arith.mulf %459, %458 : vector<8x128xf32>
    %461 = math.tanh %460 : vector<8x128xf32>
    %cst_167 = arith.constant 5.000000e-01 : f32
    %462 = vector.broadcast %cst_167 : f32 to vector<8x128xf32>
    %463 = arith.mulf %462, %461 : vector<8x128xf32>
    %cst_168 = arith.constant 5.000000e-01 : f32
    %464 = vector.broadcast %cst_168 : f32 to vector<8x128xf32>
    %465 = arith.addf %463, %464 : vector<8x128xf32>
    %466 = arith.mulf %455, %426 : vector<8x128xf32>
    %467 = arith.mulf %447, %457 : vector<8x128xf32>
    %468 = arith.addf %466, %467 : vector<8x128xf32>
    %469 = math.tanh %468 : vector<8x128xf32>
    %470 = arith.mulf %465, %469 : vector<8x128xf32>
    %471 = arith.truncf %470 : vector<8x128xf32> to vector<8x128xbf16>
    %472 = arith.index_cast %c10_i32 : i32 to index
    %c0_169 = arith.constant 0 : index
    %c0_170 = arith.constant 0 : index
    %473 = vector.load %arg8[%472, %c0_169, %c0_170] : memref<12x8x128xbf16, #tpu.memory_space<vmem>>, vector<1x8x128xbf16>
    %474 = vector.shape_cast %473 : vector<1x8x128xbf16> to vector<8x128xbf16>
    %475 = vector.shape_cast %471 : vector<8x128xbf16> to vector<1x8x128xbf16>
    tpu.vector_store %arg8[%472, %c0_169, %c0_170], %475 {strides = array<i32>} : memref<12x8x128xbf16, #tpu.memory_space<vmem>>, vector<1x8x128xbf16>,
    %476 = arith.truncf %470 : vector<8x128xf32> to vector<8x128xbf16>
    %c11_i32 = arith.constant 11 : i32
    %477 = arith.index_cast %c11_i32 : i32 to index
    %c0_171 = arith.constant 0 : index
    %c0_172 = arith.constant 0 : index
    %478 = vector.load %arg11[%477, %c0_171, %c0_172] : memref<12x8x512xf32, #tpu.memory_space<vmem>>, vector<1x8x512xf32>
    %479 = vector.shape_cast %478 : vector<1x8x512xf32> to vector<8x512xf32>
    %cst_173 = arith.constant dense<0.000000e+00> : vector<8x512xf32>
    %480 = tpu.matmul %476, %12, %cst_173 {dimension_numbers = #tpu.dot_dimension_numbers<[1], [0], [0], [1], [0, 0, 1, 1], [], []>} : vector<8x128xbf16>, vector<128x512xbf16>, vector<8x512xf32> -> vector<8x512xf32>
    %481 = arith.addf %479, %480 : vector<8x512xf32>
    %482 = vector.extract_strided_slice %481 {offsets = [0, 0], sizes = [8, 128], strides = [1, 1]} : vector<8x512xf32> to vector<8x128xf32>
    %cst_174 = arith.constant 5.000000e-01 : f32
    %483 = vector.broadcast %cst_174 : f32 to vector<8x128xf32>
    %484 = arith.mulf %483, %482 : vector<8x128xf32>
    %485 = math.tanh %484 : vector<8x128xf32>
    %cst_175 = arith.constant 5.000000e-01 : f32
    %486 = vector.broadcast %cst_175 : f32 to vector<8x128xf32>
    %487 = arith.mulf %486, %485 : vector<8x128xf32>
    %cst_176 = arith.constant 5.000000e-01 : f32
    %488 = vector.broadcast %cst_176 : f32 to vector<8x128xf32>
    %489 = arith.addf %487, %488 : vector<8x128xf32>
    %490 = vector.extract_strided_slice %481 {offsets = [0, 128], sizes = [8, 128], strides = [1, 1]} : vector<8x512xf32> to vector<8x128xf32>
    %cst_177 = arith.constant 5.000000e-01 : f32
    %491 = vector.broadcast %cst_177 : f32 to vector<8x128xf32>
    %492 = arith.mulf %491, %490 : vector<8x128xf32>
    %493 = math.tanh %492 : vector<8x128xf32>
    %cst_178 = arith.constant 5.000000e-01 : f32
    %494 = vector.broadcast %cst_178 : f32 to vector<8x128xf32>
    %495 = arith.mulf %494, %493 : vector<8x128xf32>
    %cst_179 = arith.constant 5.000000e-01 : f32
    %496 = vector.broadcast %cst_179 : f32 to vector<8x128xf32>
    %497 = arith.addf %495, %496 : vector<8x128xf32>
    %498 = vector.extract_strided_slice %481 {offsets = [0, 256], sizes = [8, 128], strides = [1, 1]} : vector<8x512xf32> to vector<8x128xf32>
    %499 = math.tanh %498 : vector<8x128xf32>
    %500 = vector.extract_strided_slice %481 {offsets = [0, 384], sizes = [8, 128], strides = [1, 1]} : vector<8x512xf32> to vector<8x128xf32>
    %cst_180 = arith.constant 5.000000e-01 : f32
    %501 = vector.broadcast %cst_180 : f32 to vector<8x128xf32>
    %502 = arith.mulf %501, %500 : vector<8x128xf32>
    %503 = math.tanh %502 : vector<8x128xf32>
    %cst_181 = arith.constant 5.000000e-01 : f32
    %504 = vector.broadcast %cst_181 : f32 to vector<8x128xf32>
    %505 = arith.mulf %504, %503 : vector<8x128xf32>
    %cst_182 = arith.constant 5.000000e-01 : f32
    %506 = vector.broadcast %cst_182 : f32 to vector<8x128xf32>
    %507 = arith.addf %505, %506 : vector<8x128xf32>
    %508 = arith.mulf %497, %468 : vector<8x128xf32>
    %509 = arith.mulf %489, %499 : vector<8x128xf32>
    %510 = arith.addf %508, %509 : vector<8x128xf32>
    %511 = math.tanh %510 : vector<8x128xf32>
    %512 = arith.mulf %507, %511 : vector<8x128xf32>
    %513 = arith.truncf %512 : vector<8x128xf32> to vector<8x128xbf16>
    %514 = arith.index_cast %c11_i32 : i32 to index
    %c0_183 = arith.constant 0 : index
    %c0_184 = arith.constant 0 : index
    %515 = vector.load %arg8[%514, %c0_183, %c0_184] : memref<12x8x128xbf16, #tpu.memory_space<vmem>>, vector<1x8x128xbf16>
    %516 = vector.shape_cast %515 : vector<1x8x128xbf16> to vector<8x128xbf16>
    %517 = vector.shape_cast %513 : vector<8x128xbf16> to vector<1x8x128xbf16>
    tpu.vector_store %arg8[%514, %c0_183, %c0_184], %517 {strides = array<i32>} : memref<12x8x128xbf16, #tpu.memory_space<vmem>>, vector<1x8x128xbf16>,
    %518 = arith.truncf %512 : vector<8x128xf32> to vector<8x128xbf16>
    %c12_i32 = arith.constant 12 : i32
    %c0_185 = arith.constant 0 : index
    %c0_186 = arith.constant 0 : index
    %519 = vector.load %arg12[%c0_185, %c0_186] : memref<8x128xbf16, #tpu.memory_space<vmem>>, vector<8x128xbf16>
    tpu.vector_store %arg12[%c0_185, %c0_186], %518 {strides = array<i32>} : memref<8x128xbf16, #tpu.memory_space<vmem>>, vector<8x128xbf16>,
    %c0_187 = arith.constant 0 : index
    %c0_188 = arith.constant 0 : index
    %520 = vector.load %arg13[%c0_187, %c0_188] : memref<8x128xf32, #tpu.memory_space<vmem>>, vector<8x128xf32>
    tpu.vector_store %arg13[%c0_187, %c0_188], %510 {strides = array<i32>} : memref<8x128xf32, #tpu.memory_space<vmem>>, vector<8x128xf32>,
    %c0_i32_189 = arith.constant 0 : i32
    %521 = arith.cmpi eq, %arg1, %c0_i32_189 : i32
    %522 = arith.extui %521 : i1 to i32
    %c0_i32_190 = arith.constant 0 : i32
    %523 = arith.cmpi ne, %522, %c0_i32_190 : i32
    scf.if %523 {
      %524 = arith.extf %518 : vector<8x128xbf16> to vector<8x128xf32>
      %c0_191 = arith.constant 0 : index
      %c0_192 = arith.constant 0 : index
      %525 = vector.load %arg9[%c0_191, %c0_192] : memref<8x128xf32, #tpu.memory_space<vmem>>, vector<8x128xf32>
      tpu.vector_store %arg9[%c0_191, %c0_192], %524 {strides = array<i32>} : memref<8x128xf32, #tpu.memory_space<vmem>>, vector<8x128xf32>,
      %c0_193 = arith.constant 0 : index
      %c0_194 = arith.constant 0 : index
      %526 = vector.load %arg10[%c0_193, %c0_194] : memref<8x128xf32, #tpu.memory_space<vmem>>, vector<8x128xf32>
      tpu.vector_store %arg10[%c0_193, %c0_194], %510 {strides = array<i32>} : memref<8x128xf32, #tpu.memory_space<vmem>>, vector<8x128xf32>,
    } else {
    }
    return
  }
  func.func @transform_0(%arg0: i32, %arg1: i32) -> (i32, i32, i32) {
    %c0_i32 = arith.constant 0 : i32
    %c0_i32_0 = arith.constant 0 : i32
    return %arg1, %arg0, %c0_i32 : i32, i32, i32
  }
  func.func @transform_1(%arg0: i32, %arg1: i32) -> (i32, i32) {
    %c0_i32 = arith.constant 0 : i32
    %c0_i32_0 = arith.constant 0 : i32
    %c0_i32_1 = arith.constant 0 : i32
    return %c0_i32, %c0_i32_0 : i32, i32
  }
  func.func @transform_2(%arg0: i32, %arg1: i32) -> (i32, i32) {
    %c0_i32 = arith.constant 0 : i32
    %c0_i32_0 = arith.constant 0 : i32
    %c0_i32_1 = arith.constant 0 : i32
    return %c0_i32, %c0_i32_0 : i32, i32
  }
  func.func @transform_3(%arg0: i32, %arg1: i32) -> (i32, i32) {
    %c0_i32 = arith.constant 0 : i32
    %c0_i32_0 = arith.constant 0 : i32
    %c0_i32_1 = arith.constant 0 : i32
    return %c0_i32, %c0_i32_0 : i32, i32
  }
  func.func @transform_4(%arg0: i32, %arg1: i32) -> (i32, i32) {
    %c0_i32 = arith.constant 0 : i32
    %c0_i32_0 = arith.constant 0 : i32
    return %arg0, %c0_i32 : i32, i32
  }
  func.func @transform_5(%arg0: i32, %arg1: i32) -> (i32, i32) {
    %c0_i32 = arith.constant 0 : i32
    %c0_i32_0 = arith.constant 0 : i32
    return %arg0, %c0_i32 : i32, i32
  }
  func.func @transform_6(%arg0: i32, %arg1: i32) -> (i32, i32, i32) {
    %c0_i32 = arith.constant 0 : i32
    %c0_i32_0 = arith.constant 0 : i32
    return %arg1, %arg0, %c0_i32 : i32, i32, i32
  }
  func.func @transform_7(%arg0: i32, %arg1: i32) -> (i32, i32) {
    %c0_i32 = arith.constant 0 : i32
    %c0_i32_0 = arith.constant 0 : i32
    return %arg0, %c0_i32 : i32, i32
  }
  func.func @transform_8(%arg0: i32, %arg1: i32) -> (i32, i32) {
    %c0_i32 = arith.constant 0 : i32
    %c0_i32_0 = arith.constant 0 : i32
    return %arg0, %c0_i32 : i32, i32
  }
}

</mosaic_0001>

<llo_original>
// kernel: tpu_custom_call.1
$region0: #{tpu_custom_call.1}
  #allocation0 [shape = 'u32[]', space=smem, size = 0x4, offset = 0x4, fixed_abs, tag = 'smem constant byte address 0x4 - core index']
  #allocation1 [shape = 'u32[72,128]{1,0:T(1,128)}', space=vmem, size = 0x9000, scoped, tag = 'internal scratch']
  #allocation2 [shape = 'f32[12,8,512]{2,1,0:T(8,128)}', space=vmem, size = 0x30000, scoped, tag = 'scratch operand']
  #allocation3 [shape = 'bf16[8,128]{1,0:T(8,128)(2,1)}', space=vmem, size = 0x800, scoped, tag = 'scratch operand']
  #allocation4 [shape = 'f32[8,128]{1,0:T(8,128)}', space=vmem, size = 0x1000, scoped, tag = 'scratch operand']
  %s0 = inlined_call_operand.hbm [shape: bf16[12,8,128], index: 0, kind: input, shape index: {}]
  %s1 = inlined_call_operand.hbm [shape: bf16[128,512], index: 1, kind: input, shape index: {}]
  %s2 = inlined_call_operand.hbm [shape: bf16[128,512], index: 2, kind: input, shape index: {}]
  %s3 = inlined_call_operand.hbm [shape: f32[1,512], index: 3, kind: input, shape index: {}]
  %s4 = inlined_call_operand.hbm [shape: f32[8,128], index: 4, kind: input, shape index: {}]
  %s5 = inlined_call_operand.hbm [shape: f32[8,128], index: 5, kind: input, shape index: {}]
  %s6 = inlined_call_operand.hbm [shape: bf16[12,8,128], index: 6, kind: output, shape index: {0}]
  %s7 = inlined_call_operand.hbm [shape: f32[8,128], index: 7, kind: output, shape index: {1}]
  %s8 = inlined_call_operand.hbm [shape: f32[8,128], index: 8, kind: output, shape index: {2}]
  %9 = xla_tuple %s6, %s7, %s8
  %s10 = sld [smem:[#allocation0]]
  $region82: #{tpu_custom_call.1} parent=0
    _
  %s12 = ssub.s32 1, %s10
  %s13 = scalar_select 0, %s12, %s10
  $region1: #{tpu_custom_call.1} parent=0
    #allocation5 [shape = 'u8[24576]{0}', space=vmem, size = 0x6000, scoped, tag = 'input window, operand 0, single buffered']
    #allocation6 [shape = 's32[1]{0}', space=sflag, size = 0x4, scoped, tag = 'scoped memory for tpu_custom_call.1']
    #allocation7 [shape = 's32[1]{0}', space=sflag, size = 0x4, scoped, tag = 'scoped memory for tpu_custom_call.1']
    #allocation8 [shape = 'u8[131072]{0}', space=vmem, size = 0x20000, scoped, tag = 'input window, operand 1, single buffered']
    #allocation9 [shape = 's32[1]{0}', space=sflag, size = 0x4, scoped, tag = 'scoped memory for tpu_custom_call.1']
    #allocation10 [shape = 'u8[131072]{0}', space=vmem, size = 0x20000, scoped, tag = 'input window, operand 2, single buffered']
    #allocation11 [shape = 'u8[2048]{0}', space=vmem, size = 0x800, scoped, tag = 'input window, operand 3, single buffered']
    #allocation12 [shape = 's32[1]{0}', space=sflag, size = 0x4, scoped, tag = 'scoped memory for tpu_custom_call.1']
    #allocation13 [shape = 'u8[4096]{0}', space=vmem, size = 0x1000, scoped, tag = 'input window, operand 4, single buffered']
    #allocation14 [shape = 'u8[4096]{0}', space=vmem, size = 0x1000, scoped, tag = 'input window, operand 5, single buffered']
    #allocation15 [shape = 's32[1]{0}', space=sflag, size = 0x4, scoped, tag = 'scoped memory for tpu_custom_call.1']
    #allocation16 [shape = 'u8[24576]{0}', space=vmem, size = 0x6000, scoped, tag = 'output window, operand 0, single buffered']
    #allocation17 [shape = 'u8[4096]{0}', space=vmem, size = 0x1000, scoped, tag = 'output window, operand 1, single buffered']
    #allocation18 [shape = 's32[1]{0}', space=sflag, size = 0x4, scoped, tag = 'scoped memory for tpu_custom_call.1']
    #allocation19 [shape = 'u8[4096]{0}', space=vmem, size = 0x1000, scoped, tag = 'output window, operand 2, single buffered']
    %14 = vsyncpa [#allocation6], 0
    %15 = vsyncpa [#allocation9], 0
    %16 = vsyncpa [#allocation12], 0
    %17 = vsyncpa [#allocation15], 0
    %18 = vsyncpa [#allocation7], 0
    %19 = vsyncpa [#allocation18], 0
    // Predicated region
    $region2: #{tpu_custom_call.1} parent=1 // pred_check
      _
    $region3: #{tpu_custom_call.1} parent=1 // pred_check_branch
      %21 = sbr.rel (0) target = $region5
    $region4: #{tpu_custom_call.1} parent=1 // pred_region
      %23 = vsyncadd [#allocation6], 0
      %s24 = sshll.u32 %s0, 4
      %s25 = int_to_ptr.hbm [resolvable:$true] %s24
      %s26 = sshll.u32 [#allocation5], 4
      %s27 = int_to_ptr.vmem [resolvable:$true] %s26
      %32 = dma.hbm_to_vmem [thread:$0]  %s25, 768, %s27, [#allocation6], 64, 64, 4
    $region5: #{tpu_custom_call.1} parent=1 // pred_fallthru
      _
    // Predicated region
    $region6: #{tpu_custom_call.1} parent=1 // pred_check
      _
    $region7: #{tpu_custom_call.1} parent=1 // pred_check_branch
      %34 = sbr.rel (0) target = $region9
    $region8: #{tpu_custom_call.1} parent=1 // pred_region
      %36 = vsyncadd [#allocation9], 0
      %s37 = sshll.u32 %s1, 4
      %s38 = int_to_ptr.hbm [resolvable:$true] %s37
      %s39 = sshll.u32 [#allocation8], 4
      %s40 = int_to_ptr.vmem [resolvable:$true] %s39
      %45 = dma.hbm_to_vmem [thread:$0]  %s38, 4096, %s40, [#allocation9], 256, 256, 16
    $region9: #{tpu_custom_call.1} parent=1 // pred_fallthru
      _
    // Predicated region
    $region10: #{tpu_custom_call.1} parent=1 // pred_check
      _
    $region11: #{tpu_custom_call.1} parent=1 // pred_check_branch
      %47 = sbr.rel (0) target = $region13
    $region12: #{tpu_custom_call.1} parent=1 // pred_region
      %49 = vsyncadd [#allocation9], 0
      %s50 = sshll.u32 %s2, 4
      %s51 = int_to_ptr.hbm [resolvable:$true] %s50
      %s52 = sshll.u32 [#allocation10], 4
      %s53 = int_to_ptr.vmem [resolvable:$true] %s52
      %58 = dma.hbm_to_vmem [thread:$0]  %s51, 4096, %s53, [#allocation9], 256, 256, 16
    $region13: #{tpu_custom_call.1} parent=1 // pred_fallthru
      _
    // Predicated region
    $region14: #{tpu_custom_call.1} parent=1 // pred_check
      _
    $region15: #{tpu_custom_call.1} parent=1 // pred_check_branch
      %60 = sbr.rel (0) target = $region17
    $region16: #{tpu_custom_call.1} parent=1 // pred_region
      %62 = vsyncadd [#allocation12], 0
      %s64 = sshll.u32 %s3, 4
      %s65 = int_to_ptr.hbm [resolvable:$true] %s64
      %s66 = sshll.u32 [#allocation11], 4
      %s67 = int_to_ptr.vmem [resolvable:$true] %s66
      %69 = dma.hbm_to_vmem [thread:$0]  %s65, 64, %s67, [#allocation12]
    $region17: #{tpu_custom_call.1} parent=1 // pred_fallthru
      _
    // Predicated region
    $region18: #{tpu_custom_call.1} parent=1 // pred_check
      _
    $region19: #{tpu_custom_call.1} parent=1 // pred_check_branch
      %71 = sbr.rel (0) target = $region21
    $region20: #{tpu_custom_call.1} parent=1 // pred_region
      %73 = vsyncadd [#allocation12], 0
      %s75 = sshll.u32 %s4, 4
      %s76 = int_to_ptr.hbm [resolvable:$true] %s75
      %s77 = sshll.u32 [#allocation13], 4
      %s78 = int_to_ptr.vmem [resolvable:$true] %s77
      %80 = dma.hbm_to_vmem [thread:$0]  %s76, 128, %s78, [#allocation12]
    $region21: #{tpu_custom_call.1} parent=1 // pred_fallthru
      _
    // Predicated region
    $region22: #{tpu_custom_call.1} parent=1 // pred_check
      _
    $region23: #{tpu_custom_call.1} parent=1 // pred_check_branch
      %82 = sbr.rel (0) target = $region25
    $region24: #{tpu_custom_call.1} parent=1 // pred_region
      %84 = vsyncadd [#allocation15], 0
      %s86 = sshll.u32 %s5, 4
      %s87 = int_to_ptr.hbm [resolvable:$true] %s86
      %s88 = sshll.u32 [#allocation14], 4
      %s89 = int_to_ptr.vmem [resolvable:$true] %s88
      %91 = dma.hbm_to_vmem [thread:$0]  %s87, 128, %s89, [#allocation15]
    $region25: #{tpu_custom_call.1} parent=1 // pred_fallthru
      _
    // Predicated region
    $region26: #{tpu_custom_call.1} parent=1 // pred_check
      _
    $region27: #{tpu_custom_call.1} parent=1 // pred_check_branch
      %93 = sbr.rel (0) target = $region29
    $region28: #{tpu_custom_call.1} parent=1 // pred_region
      %95 = dma.done [#allocation6], 768
    $region29: #{tpu_custom_call.1} parent=1 // pred_fallthru
      _
    // Predicated region
    $region30: #{tpu_custom_call.1} parent=1 // pred_check
      _
    $region31: #{tpu_custom_call.1} parent=1 // pred_check_branch
      %97 = sbr.rel (0) target = $region33
    $region32: #{tpu_custom_call.1} parent=1 // pred_region
      %99 = dma.done [#allocation9], 4096
    $region33: #{tpu_custom_call.1} parent=1 // pred_fallthru
      _
    // Predicated region
    $region34: #{tpu_custom_call.1} parent=1 // pred_check
      _
    $region35: #{tpu_custom_call.1} parent=1 // pred_check_branch
      %101 = sbr.rel (0) target = $region37
    $region36: #{tpu_custom_call.1} parent=1 // pred_region
      %103 = dma.done [#allocation9], 4096
    $region37: #{tpu_custom_call.1} parent=1 // pred_fallthru
      _
    // Predicated region
    $region38: #{tpu_custom_call.1} parent=1 // pred_check
      _
    $region39: #{tpu_custom_call.1} parent=1 // pred_check_branch
      %105 = sbr.rel (0) target = $region41
    $region40: #{tpu_custom_call.1} parent=1 // pred_region
      %107 = dma.done [#allocation12], 64
    $region41: #{tpu_custom_call.1} parent=1 // pred_fallthru
      _
    // Predicated region
    $region42: #{tpu_custom_call.1} parent=1 // pred_check
      _
    $region43: #{tpu_custom_call.1} parent=1 // pred_check_branch
      %109 = sbr.rel (0) target = $region45
    $region44: #{tpu_custom_call.1} parent=1 // pred_region
      %111 = dma.done [#allocation12], 128
    $region45: #{tpu_custom_call.1} parent=1 // pred_fallthru
      _
    // Predicated region
    $region46: #{tpu_custom_call.1} parent=1 // pred_check
      _
    $region47: #{tpu_custom_call.1} parent=1 // pred_check_branch
      %113 = sbr.rel (0) target = $region49
    $region48: #{tpu_custom_call.1} parent=1 // pred_region
      %115 = dma.done [#allocation15], 128
    $region49: #{tpu_custom_call.1} parent=1 // pred_fallthru
      _
    %p116 = scmp.eq.s32.totalorder 0, 0
    // Predicated region
    $region50: #{tpu_custom_call.1} parent=1 // pred_check
      %p117 = pneg %p116
    $region51: #{tpu_custom_call.1} parent=1 // pred_check_branch
      %119 = sbr.rel (%p117) target = $region53
    $region52: #{tpu_custom_call.1} parent=1 // pred_region
      %v120 = vld [vmem:[#allocation13] sm:$0xff]
      %v121 = vpack.c.bf16 %v120, %v120
      %122 = vst [vmem:[#allocation3] sm:$0xf] %v121
      %v123 = vld [vmem:[#allocation14] sm:$0xff]
      %124 = vst [vmem:[#allocation4] sm:$0xff] %v123
    $region53: #{tpu_custom_call.1} parent=1 // pred_fallthru
      _
    %v125 = vld [vmem:[#allocation5] sm:$0xf]
    %v126 = vld [vmem:[#allocation5 + $0x4] sm:$0xf]
    %v127 = vld [vmem:[#allocation5 + $0x8] sm:$0xf]
    %v128 = vld [vmem:[#allocation5 + $0xc] sm:$0xf]
    %v129 = vld [vmem:[#allocation5 + $0x10] sm:$0xf]
    %v130 = vld [vmem:[#allocation5 + $0x14] sm:$0xf]
    %v131 = vld [vmem:[#allocation5 + $0x18] sm:$0xf]
    %v132 = vld [vmem:[#allocation5 + $0x1c] sm:$0xf]
    %v133 = vld [vmem:[#allocation5 + $0x20] sm:$0xf]
    %v134 = vld [vmem:[#allocation5 + $0x24] sm:$0xf]
    %v135 = vld [vmem:[#allocation5 + $0x28] sm:$0xf]
    %v136 = vld [vmem:[#allocation5 + $0x2c] sm:$0xf]
    %v137 = vld [vmem:[#allocation8] sm:$0xff]
    %v138 = vld [vmem:[#allocation8 + $0x8] sm:$0xff]
    %v139 = vld [vmem:[#allocation8 + $0x10] sm:$0xff]
    %v140 = vld [vmem:[#allocation8 + $0x18] sm:$0xff]
    %v141 = vld [vmem:[#allocation8 + $0x20] sm:$0xff]
    %v142 = vld [vmem:[#allocation8 + $0x28] sm:$0xff]
    %v143 = vld [vmem:[#allocation8 + $0x30] sm:$0xff]
    %v144 = vld [vmem:[#allocation8 + $0x38] sm:$0xff]
    %v145 = vld [vmem:[#allocation8 + $0x40] sm:$0xff]
    %v146 = vld [vmem:[#allocation8 + $0x48] sm:$0xff]
    %v147 = vld [vmem:[#allocation8 + $0x50] sm:$0xff]
    %v148 = vld [vmem:[#allocation8 + $0x58] sm:$0xff]
    %v149 = vld [vmem:[#allocation8 + $0x60] sm:$0xff]
    %v150 = vld [vmem:[#allocation8 + $0x68] sm:$0xff]
    %v151 = vld [vmem:[#allocation8 + $0x70] sm:$0xff]
    %v152 = vld [vmem:[#allocation8 + $0x78] sm:$0xff]
    %v153 = vld [vmem:[#allocation8 + $0x80] sm:$0xff]
    %v154 = vld [vmem:[#allocation8 + $0x88] sm:$0xff]
    %v155 = vld [vmem:[#allocation8 + $0x90] sm:$0xff]
    %v156 = vld [vmem:[#allocation8 + $0x98] sm:$0xff]
    %v157 = vld [vmem:[#allocation8 + $0xa0] sm:$0xff]
    %v158 = vld [vmem:[#allocation8 + $0xa8] sm:$0xff]
    %v159 = vld [vmem:[#allocation8 + $0xb0] sm:$0xff]
    %v160 = vld [vmem:[#allocation8 + $0xb8] sm:$0xff]
    %v161 = vld [vmem:[#allocation8 + $0xc0] sm:$0xff]
    %v162 = vld [vmem:[#allocation8 + $0xc8] sm:$0xff]
    %v163 = vld [vmem:[#allocation8 + $0xd0] sm:$0xff]
    %v164 = vld [vmem:[#allocation8 + $0xd8] sm:$0xff]
    %v165 = vld [vmem:[#allocation8 + $0xe0] sm:$0xff]
    %v166 = vld [vmem:[#allocation8 + $0xe8] sm:$0xff]
    %v167 = vld [vmem:[#allocation8 + $0xf0] sm:$0xff]
    %v168 = vld [vmem:[#allocation8 + $0xf8] sm:$0xff]
    %v169 = vld [vmem:[#allocation11] sm:$0xf]
    %v171 = vperm.slane %v169, 0
    %v172 = vperm.slane %v169, 1
    %v173 = vperm.slane %v169, 2
    %v174 = vperm.slane %v169, 3
    %v191 = vunpack.c.l.b16 %v125
    %v192 = vunpack.c.l.b16 %v126
    %v193 = vunpack.c.l.b16 %v127
    %v194 = vunpack.c.l.b16 %v128
    %v195 = vunpack.c.l.b16 %v129
    %v196 = vunpack.c.l.b16 %v130
    %v197 = vunpack.c.l.b16 %v131
    %v198 = vunpack.c.l.b16 %v132
    %v199 = vunpack.c.l.b16 %v133
    %v200 = vunpack.c.l.b16 %v134
    %v201 = vunpack.c.l.b16 %v135
    %v202 = vunpack.c.l.b16 %v136
    %v203 = vpack.c.b16 %v192, %v191
    %v204 = vpack.c.b16 %v194, %v193
    %v205 = vpack.c.b16 %v196, %v195
    %v206 = vpack.c.b16 %v198, %v197
    %v207 = vpack.c.b16 %v200, %v199
    %v208 = vpack.c.b16 %v202, %v201
    %v247 = vunpack.c.l.b16 %v137
    %v248 = vunpack.c.h.b16 %v137
    %v249 = vunpack.c.l.b16 %v138
    %v250 = vunpack.c.h.b16 %v138
    %v251 = vunpack.c.l.b16 %v139
    %v252 = vunpack.c.h.b16 %v139
    %v253 = vunpack.c.l.b16 %v140
    %v254 = vunpack.c.h.b16 %v140
    %v255 = vunpack.c.l.b16 %v141
    %v256 = vunpack.c.h.b16 %v141
    %v257 = vunpack.c.l.b16 %v142
    %v258 = vunpack.c.h.b16 %v142
    %v259 = vunpack.c.l.b16 %v143
    %v260 = vunpack.c.h.b16 %v143
    %v261 = vunpack.c.l.b16 %v144
    %v262 = vunpack.c.h.b16 %v144
    %v263 = vunpack.c.l.b16 %v145
    %v264 = vunpack.c.h.b16 %v145
    %v265 = vunpack.c.l.b16 %v146
    %v266 = vunpack.c.h.b16 %v146
    %v267 = vunpack.c.l.b16 %v147
    %v268 = vunpack.c.h.b16 %v147
    %v269 = vunpack.c.l.b16 %v148
    %v270 = vunpack.c.h.b16 %v148
    %v271 = vunpack.c.l.b16 %v149
    %v272 = vunpack.c.h.b16 %v149
    %v273 = vunpack.c.l.b16 %v150
    %v274 = vunpack.c.h.b16 %v150
    %v275 = vunpack.c.l.b16 %v151
    %v276 = vunpack.c.h.b16 %v151
    %v277 = vunpack.c.l.b16 %v152
    %v278 = vunpack.c.h.b16 %v152
    %v279 = vunpack.c.l.b16 %v153
    %v280 = vunpack.c.h.b16 %v153
    %v281 = vunpack.c.l.b16 %v154
    %v282 = vunpack.c.h.b16 %v154
    %v283 = vunpack.c.l.b16 %v155
    %v284 = vunpack.c.h.b16 %v155
    %v285 = vunpack.c.l.b16 %v156
    %v286 = vunpack.c.h.b16 %v156
    %v287 = vunpack.c.l.b16 %v157
    %v288 = vunpack.c.h.b16 %v157
    %v289 = vunpack.c.l.b16 %v158
    %v290 = vunpack.c.h.b16 %v158
    %v291 = vunpack.c.l.b16 %v159
    %v292 = vunpack.c.h.b16 %v159
    %v293 = vunpack.c.l.b16 %v160
    %v294 = vunpack.c.h.b16 %v160
    %v295 = vunpack.c.l.b16 %v161
    %v296 = vunpack.c.h.b16 %v161
    %v297 = vunpack.c.l.b16 %v162
    %v298 = vunpack.c.h.b16 %v162
    %v299 = vunpack.c.l.b16 %v163
    %v300 = vunpack.c.h.b16 %v163
    %v301 = vunpack.c.l.b16 %v164
    %v302 = vunpack.c.h.b16 %v164
    %v303 = vunpack.c.l.b16 %v165
    %v304 = vunpack.c.h.b16 %v165
    %v305 = vunpack.c.l.b16 %v166
    %v306 = vunpack.c.h.b16 %v166
    %v307 = vunpack.c.l.b16 %v167
    %v308 = vunpack.c.h.b16 %v167
    %v309 = vunpack.c.l.b16 %v168
    %v310 = vunpack.c.h.b16 %v168
    %v311 = vpack.c.b16 %v251, %v247
    %v312 = vpack.c.b16 %v252, %v248
    %v313 = vpack.c.b16 %v253, %v249
    %v314 = vpack.c.b16 %v254, %v250
    %v315 = vpack.c.b16 %v259, %v255
    %v316 = vpack.c.b16 %v260, %v256
    %v317 = vpack.c.b16 %v261, %v257
    %v318 = vpack.c.b16 %v262, %v258
    %v319 = vpack.c.b16 %v267, %v263
    %v320 = vpack.c.b16 %v268, %v264
    %v321 = vpack.c.b16 %v269, %v265
    %v322 = vpack.c.b16 %v270, %v266
    %v323 = vpack.c.b16 %v275, %v271
    %v324 = vpack.c.b16 %v276, %v272
    %v325 = vpack.c.b16 %v277, %v273
    %v326 = vpack.c.b16 %v278, %v274
    %v327 = vpack.c.b16 %v283, %v279
    %v328 = vpack.c.b16 %v284, %v280
    %v329 = vpack.c.b16 %v285, %v281
    %v330 = vpack.c.b16 %v286, %v282
    %v331 = vpack.c.b16 %v291, %v287
    %v332 = vpack.c.b16 %v292, %v288
    %v333 = vpack.c.b16 %v293, %v289
    %v334 = vpack.c.b16 %v294, %v290
    %v335 = vpack.c.b16 %v299, %v295
    %v336 = vpack.c.b16 %v300, %v296
    %v337 = vpack.c.b16 %v301, %v297
    %v338 = vpack.c.b16 %v302, %v298
    %v339 = vpack.c.b16 %v307, %v303
    %v340 = vpack.c.b16 %v308, %v304
    %v341 = vpack.c.b16 %v309, %v305
    %v342 = vpack.c.b16 %v310, %v306
    %375 = vmatpush.bf16.msra.mxu0 %v339
    %376 = vmatpush.bf16.msra.mxu0 %v335
    %377 = vmatpush.bf16.msra.mxu0 %v331
    %378 = vmatpush.bf16.msra.mxu0 %v327
    %379 = vmatpush.bf16.msra.mxu0 %v323
    %380 = vmatpush.bf16.msra.mxu0 %v319
    %381 = vmatpush.bf16.msra.mxu0 %v315
    %382 = vmatpush.bf16.msra.mxu0 %v311
    %383 = vmatmul.bf16.gmra.mxu0 %v203
    %v384 = vpop.f32.mrf.mxu0
    %v385 = vadd.f32 %v171, %v384
    %v386 = vpop.f32.mrf.mxu0
    %v387 = vadd.f32 %v171, %v386
    %388 = vmatmul.bf16.gmra.mxu0 %v204
    %v389 = vpop.f32.mrf.mxu0
    %v390 = vadd.f32 %v171, %v389
    %v391 = vpop.f32.mrf.mxu0
    %v392 = vadd.f32 %v171, %v391
    %393 = vmatmul.bf16.gmra.mxu0 %v205
    %v394 = vpop.f32.mrf.mxu0
    %v395 = vadd.f32 %v171, %v394
    %v396 = vpop.f32.mrf.mxu0
    %v397 = vadd.f32 %v171, %v396
    %398 = vmatmul.bf16.gmra.mxu0 %v206
    %v399 = vpop.f32.mrf.mxu0
    %v400 = vadd.f32 %v171, %v399
    %v401 = vpop.f32.mrf.mxu0
    %v402 = vadd.f32 %v171, %v401
    %403 = vmatmul.bf16.gmra.mxu0 %v207
    %v404 = vpop.f32.mrf.mxu0
    %v405 = vadd.f32 %v171, %v404
    %v406 = vpop.f32.mrf.mxu0
    %v407 = vadd.f32 %v171, %v406
    %408 = vmatmul.bf16.gmra.mxu0 %v208
    %v409 = vpop.f32.mrf.mxu0
    %v410 = vadd.f32 %v171, %v409
    %v411 = vpop.f32.mrf.mxu0
    %v412 = vadd.f32 %v171, %v411
    %413 = vdwg.mxu0
    %414 = vmatpush.bf16.msra.mxu0 %v340
    %415 = vmatpush.bf16.msra.mxu0 %v336
    %416 = vmatpush.bf16.msra.mxu0 %v332
    %417 = vmatpush.bf16.msra.mxu0 %v328
    %418 = vmatpush.bf16.msra.mxu0 %v324
    %419 = vmatpush.bf16.msra.mxu0 %v320
    %420 = vmatpush.bf16.msra.mxu0 %v316
    %421 = vmatpush.bf16.msra.mxu0 %v312
    %422 = vmatmul.bf16.gmra.mxu0 %v203
    %v423 = vpop.f32.mrf.mxu0
    %v424 = vadd.f32 %v172, %v423
    %v425 = vpop.f32.mrf.mxu0
    %v426 = vadd.f32 %v172, %v425
    %427 = vmatmul.bf16.gmra.mxu0 %v204
    %v428 = vpop.f32.mrf.mxu0
    %v429 = vadd.f32 %v172, %v428
    %v430 = vpop.f32.mrf.mxu0
    %v431 = vadd.f32 %v172, %v430
    %432 = vmatmul.bf16.gmra.mxu0 %v205
    %v433 = vpop.f32.mrf.mxu0
    %v434 = vadd.f32 %v172, %v433
    %v435 = vpop.f32.mrf.mxu0
    %v436 = vadd.f32 %v172, %v435
    %437 = vmatmul.bf16.gmra.mxu0 %v206
    %v438 = vpop.f32.mrf.mxu0
    %v439 = vadd.f32 %v172, %v438
    %v440 = vpop.f32.mrf.mxu0
    %v441 = vadd.f32 %v172, %v440
    %442 = vmatmul.bf16.gmra.mxu0 %v207
    %v443 = vpop.f32.mrf.mxu0
    %v444 = vadd.f32 %v172, %v443
    %v445 = vpop.f32.mrf.mxu0
    %v446 = vadd.f32 %v172, %v445
    %447 = vmatmul.bf16.gmra.mxu0 %v208
    %v448 = vpop.f32.mrf.mxu0
    %v449 = vadd.f32 %v172, %v448
    %v450 = vpop.f32.mrf.mxu0
    %v451 = vadd.f32 %v172, %v450
    %452 = vdwg.mxu0
    %453 = vmatpush.bf16.msra.mxu0 %v341
    %454 = vmatpush.bf16.msra.mxu0 %v337
    %455 = vmatpush.bf16.msra.mxu0 %v333
    %456 = vmatpush.bf16.msra.mxu0 %v329
    %457 = vmatpush.bf16.msra.mxu0 %v325
    %458 = vmatpush.bf16.msra.mxu0 %v321
    %459 = vmatpush.bf16.msra.mxu0 %v317
    %460 = vmatpush.bf16.msra.mxu0 %v313
    %461 = vmatmul.bf16.gmra.mxu0 %v203
    %v462 = vpop.f32.mrf.mxu0
    %v463 = vadd.f32 %v173, %v462
    %v464 = vpop.f32.mrf.mxu0
    %v465 = vadd.f32 %v173, %v464
    %466 = vmatmul.bf16.gmra.mxu0 %v204
    %v467 = vpop.f32.mrf.mxu0
    %v468 = vadd.f32 %v173, %v467
    %v469 = vpop.f32.mrf.mxu0
    %v470 = vadd.f32 %v173, %v469
    %471 = vmatmul.bf16.gmra.mxu0 %v205
    %v472 = vpop.f32.mrf.mxu0
    %v473 = vadd.f32 %v173, %v472
    %v474 = vpop.f32.mrf.mxu0
    %v475 = vadd.f32 %v173, %v474
    %476 = vmatmul.bf16.gmra.mxu0 %v206
    %v477 = vpop.f32.mrf.mxu0
    %v478 = vadd.f32 %v173, %v477
    %v479 = vpop.f32.mrf.mxu0
    %v480 = vadd.f32 %v173, %v479
    %481 = vmatmul.bf16.gmra.mxu0 %v207
    %v482 = vpop.f32.mrf.mxu0
    %v483 = vadd.f32 %v173, %v482
    %v484 = vpop.f32.mrf.mxu0
    %v485 = vadd.f32 %v173, %v484
    %486 = vmatmul.bf16.gmra.mxu0 %v208
    %v487 = vpop.f32.mrf.mxu0
    %v488 = vadd.f32 %v173, %v487
    %v489 = vpop.f32.mrf.mxu0
    %v490 = vadd.f32 %v173, %v489
    %491 = vdwg.mxu0
    %492 = vmatpush.bf16.msra.mxu0 %v342
    %493 = vmatpush.bf16.msra.mxu0 %v338
    %494 = vmatpush.bf16.msra.mxu0 %v334
    %495 = vmatpush.bf16.msra.mxu0 %v330
    %496 = vmatpush.bf16.msra.mxu0 %v326
    %497 = vmatpush.bf16.msra.mxu0 %v322
    %498 = vmatpush.bf16.msra.mxu0 %v318
    %499 = vmatpush.bf16.msra.mxu0 %v314
    %500 = vmatmul.bf16.gmra.mxu0 %v203
    %v501 = vpop.f32.mrf.mxu0
    %v502 = vadd.f32 %v174, %v501
    %v503 = vpop.f32.mrf.mxu0
    %v504 = vadd.f32 %v174, %v503
    %505 = vmatmul.bf16.gmra.mxu0 %v204
    %v506 = vpop.f32.mrf.mxu0
    %v507 = vadd.f32 %v174, %v506
    %v508 = vpop.f32.mrf.mxu0
    %v509 = vadd.f32 %v174, %v508
    %510 = vmatmul.bf16.gmra.mxu0 %v205
    %v511 = vpop.f32.mrf.mxu0
    %v512 = vadd.f32 %v174, %v511
    %v513 = vpop.f32.mrf.mxu0
    %v514 = vadd.f32 %v174, %v513
    %515 = vmatmul.bf16.gmra.mxu0 %v206
    %v516 = vpop.f32.mrf.mxu0
    %v517 = vadd.f32 %v174, %v516
    %v518 = vpop.f32.mrf.mxu0
    %v519 = vadd.f32 %v174, %v518
    %520 = vmatmul.bf16.gmra.mxu0 %v207
    %v521 = vpop.f32.mrf.mxu0
    %v522 = vadd.f32 %v174, %v521
    %v523 = vpop.f32.mrf.mxu0
    %v524 = vadd.f32 %v174, %v523
    %525 = vmatmul.bf16.gmra.mxu0 %v208
    %v526 = vpop.f32.mrf.mxu0
    %v527 = vadd.f32 %v174, %v526
    %v528 = vpop.f32.mrf.mxu0
    %v529 = vadd.f32 %v174, %v528
    %530 = vdwg.mxu0
    %531 = vst [vmem:[#allocation2] sm:$0xff] %v385
    %532 = vst [vmem:[#allocation2 + $0x8] sm:$0xff] %v424
    %533 = vst [vmem:[#allocation2 + $0x10] sm:$0xff] %v463
    %534 = vst [vmem:[#allocation2 + $0x18] sm:$0xff] %v502
    %535 = vst [vmem:[#allocation2 + $0x20] sm:$0xff] %v387
    %536 = vst [vmem:[#allocation2 + $0x28] sm:$0xff] %v426
    %537 = vst [vmem:[#allocation2 + $0x30] sm:$0xff] %v465
    %538 = vst [vmem:[#allocation2 + $0x38] sm:$0xff] %v504
    %539 = vst [vmem:[#allocation2 + $0x40] sm:$0xff] %v390
    %540 = vst [vmem:[#allocation2 + $0x48] sm:$0xff] %v429
    %541 = vst [vmem:[#allocation2 + $0x50] sm:$0xff] %v468
    %542 = vst [vmem:[#allocation2 + $0x58] sm:$0xff] %v507
    %543 = vst [vmem:[#allocation2 + $0x60] sm:$0xff] %v392
    %544 = vst [vmem:[#allocation2 + $0x68] sm:$0xff] %v431
    %545 = vst [vmem:[#allocation2 + $0x70] sm:$0xff] %v470
    %546 = vst [vmem:[#allocation2 + $0x78] sm:$0xff] %v509
    %547 = vst [vmem:[#allocation2 + $0x80] sm:$0xff] %v395
    %548 = vst [vmem:[#allocation2 + $0x88] sm:$0xff] %v434
    %549 = vst [vmem:[#allocation2 + $0x90] sm:$0xff] %v473
    %550 = vst [vmem:[#allocation2 + $0x98] sm:$0xff] %v512
    %551 = vst [vmem:[#allocation2 + $0xa0] sm:$0xff] %v397
    %552 = vst [vmem:[#allocation2 + $0xa8] sm:$0xff] %v436
    %553 = vst [vmem:[#allocation2 + $0xb0] sm:$0xff] %v475
    %554 = vst [vmem:[#allocation2 + $0xb8] sm:$0xff] %v514
    %555 = vst [vmem:[#allocation2 + $0xc0] sm:$0xff] %v400
    %556 = vst [vmem:[#allocation2 + $0xc8] sm:$0xff] %v439
    %557 = vst [vmem:[#allocation2 + $0xd0] sm:$0xff] %v478
    %558 = vst [vmem:[#allocation2 + $0xd8] sm:$0xff] %v517
    %559 = vst [vmem:[#allocation2 + $0xe0] sm:$0xff] %v402
    %560 = vst [vmem:[#allocation2 + $0xe8] sm:$0xff] %v441
    %561 = vst [vmem:[#allocation2 + $0xf0] sm:$0xff] %v480
    %562 = vst [vmem:[#allocation2 + $0xf8] sm:$0xff] %v519
    %563 = vst [vmem:[#allocation2 + $0x100] sm:$0xff] %v405
    %564 = vst [vmem:[#allocation2 + $0x108] sm:$0xff] %v444
    %565 = vst [vmem:[#allocation2 + $0x110] sm:$0xff] %v483
    %566 = vst [vmem:[#allocation2 + $0x118] sm:$0xff] %v522
    %567 = vst [vmem:[#allocation2 + $0x120] sm:$0xff] %v407
    %568 = vst [vmem:[#allocation2 + $0x128] sm:$0xff] %v446
    %569 = vst [vmem:[#allocation2 + $0x130] sm:$0xff] %v485
    %570 = vst [vmem:[#allocation2 + $0x138] sm:$0xff] %v524
    %571 = vst [vmem:[#allocation2 + $0x140] sm:$0xff] %v410
    %572 = vst [vmem:[#allocation2 + $0x148] sm:$0xff] %v449
    %573 = vst [vmem:[#allocation2 + $0x150] sm:$0xff] %v488
    %574 = vst [vmem:[#allocation2 + $0x158] sm:$0xff] %v527
    %575 = vst [vmem:[#allocation2 + $0x160] sm:$0xff] %v412
    %576 = vst [vmem:[#allocation2 + $0x168] sm:$0xff] %v451
    %577 = vst [vmem:[#allocation2 + $0x170] sm:$0xff] %v490
    %578 = vst [vmem:[#allocation2 + $0x178] sm:$0xff] %v529
    %v579 = vld [vmem:[#allocation10] sm:$0xff]
    %v580 = vld [vmem:[#allocation10 + $0x8] sm:$0xff]
    %v581 = vld [vmem:[#allocation10 + $0x10] sm:$0xff]
    %v582 = vld [vmem:[#allocation10 + $0x18] sm:$0xff]
    %v583 = vld [vmem:[#allocation10 + $0x20] sm:$0xff]
    %v584 = vld [vmem:[#allocation10 + $0x28] sm:$0xff]
    %v585 = vld [vmem:[#allocation10 + $0x30] sm:$0xff]
    %v586 = vld [vmem:[#allocation10 + $0x38] sm:$0xff]
    %v587 = vld [vmem:[#allocation10 + $0x40] sm:$0xff]
    %v588 = vld [vmem:[#allocation10 + $0x48] sm:$0xff]
    %v589 = vld [vmem:[#allocation10 + $0x50] sm:$0xff]
    %v590 = vld [vmem:[#allocation10 + $0x58] sm:$0xff]
    %v591 = vld [vmem:[#allocation10 + $0x60] sm:$0xff]
    %v592 = vld [vmem:[#allocation10 + $0x68] sm:$0xff]
    %v593 = vld [vmem:[#allocation10 + $0x70] sm:$0xff]
    %v594 = vld [vmem:[#allocation10 + $0x78] sm:$0xff]
    %v595 = vld [vmem:[#allocation10 + $0x80] sm:$0xff]
    %v596 = vld [vmem:[#allocation10 + $0x88] sm:$0xff]
    %v597 = vld [vmem:[#allocation10 + $0x90] sm:$0xff]
    %v598 = vld [vmem:[#allocation10 + $0x98] sm:$0xff]
    %v599 = vld [vmem:[#allocation10 + $0xa0] sm:$0xff]
    %v600 = vld [vmem:[#allocation10 + $0xa8] sm:$0xff]
    %v601 = vld [vmem:[#allocation10 + $0xb0] sm:$0xff]
    %v602 = vld [vmem:[#allocation10 + $0xb8] sm:$0xff]
    %v603 = vld [vmem:[#allocation10 + $0xc0] sm:$0xff]
    %v604 = vld [vmem:[#allocation10 + $0xc8] sm:$0xff]
    %v605 = vld [vmem:[#allocation10 + $0xd0] sm:$0xff]
    %v606 = vld [vmem:[#allocation10 + $0xd8] sm:$0xff]
    %v607 = vld [vmem:[#allocation10 + $0xe0] sm:$0xff]
    %v608 = vld [vmem:[#allocation10 + $0xe8] sm:$0xff]
    %v609 = vld [vmem:[#allocation10 + $0xf0] sm:$0xff]
    %v610 = vld [vmem:[#allocation10 + $0xf8] sm:$0xff]
    %v611 = vld [vmem:[#allocation3] sm:$0xf]
    %v612 = vld [vmem:[#allocation4] sm:$0xff]
    %v613 = vld [vmem:[#allocation2] sm:$0xff]
    %v614 = vld [vmem:[#allocation2 + $0x8] sm:$0xff]
    %v615 = vld [vmem:[#allocation2 + $0x10] sm:$0xff]
    %v616 = vld [vmem:[#allocation2 + $0x18] sm:$0xff]
    %v649 = vunpack.c.l.b16 %v579
    %v650 = vunpack.c.h.b16 %v579
    %v651 = vunpack.c.l.b16 %v580
    %v652 = vunpack.c.h.b16 %v580
    %v653 = vunpack.c.l.b16 %v581
    %v654 = vunpack.c.h.b16 %v581
    %v655 = vunpack.c.l.b16 %v582
    %v656 = vunpack.c.h.b16 %v582
    %v657 = vunpack.c.l.b16 %v583
    %v658 = vunpack.c.h.b16 %v583
    %v659 = vunpack.c.l.b16 %v584
    %v660 = vunpack.c.h.b16 %v584
    %v661 = vunpack.c.l.b16 %v585
    %v662 = vunpack.c.h.b16 %v585
    %v663 = vunpack.c.l.b16 %v586
    %v664 = vunpack.c.h.b16 %v586
    %v665 = vunpack.c.l.b16 %v587
    %v666 = vunpack.c.h.b16 %v587
    %v667 = vunpack.c.l.b16 %v588
    %v668 = vunpack.c.h.b16 %v588
    %v669 = vunpack.c.l.b16 %v589
    %v670 = vunpack.c.h.b16 %v589
    %v671 = vunpack.c.l.b16 %v590
    %v672 = vunpack.c.h.b16 %v590
    %v673 = vunpack.c.l.b16 %v591
    %v674 = vunpack.c.h.b16 %v591
    %v675 = vunpack.c.l.b16 %v592
    %v676 = vunpack.c.h.b16 %v592
    %v677 = vunpack.c.l.b16 %v593
    %v678 = vunpack.c.h.b16 %v593
    %v679 = vunpack.c.l.b16 %v594
    %v680 = vunpack.c.h.b16 %v594
    %v681 = vunpack.c.l.b16 %v595
    %v682 = vunpack.c.h.b16 %v595
    %v683 = vunpack.c.l.b16 %v596
    %v684 = vunpack.c.h.b16 %v596
    %v685 = vunpack.c.l.b16 %v597
    %v686 = vunpack.c.h.b16 %v597
    %v687 = vunpack.c.l.b16 %v598
    %v688 = vunpack.c.h.b16 %v598
    %v689 = vunpack.c.l.b16 %v599
    %v690 = vunpack.c.h.b16 %v599
    %v691 = vunpack.c.l.b16 %v600
    %v692 = vunpack.c.h.b16 %v600
    %v693 = vunpack.c.l.b16 %v601
    %v694 = vunpack.c.h.b16 %v601
    %v695 = vunpack.c.l.b16 %v602
    %v696 = vunpack.c.h.b16 %v602
    %v697 = vunpack.c.l.b16 %v603
    %v698 = vunpack.c.h.b16 %v603
    %v699 = vunpack.c.l.b16 %v604
    %v700 = vunpack.c.h.b16 %v604
    %v701 = vunpack.c.l.b16 %v605
    %v702 = vunpack.c.h.b16 %v605
    %v703 = vunpack.c.l.b16 %v606
    %v704 = vunpack.c.h.b16 %v606
    %v705 = vunpack.c.l.b16 %v607
    %v706 = vunpack.c.h.b16 %v607
    %v707 = vunpack.c.l.b16 %v608
    %v708 = vunpack.c.h.b16 %v608
    %v709 = vunpack.c.l.b16 %v609
    %v710 = vunpack.c.h.b16 %v609
    %v711 = vunpack.c.l.b16 %v610
    %v712 = vunpack.c.h.b16 %v610
    %v713 = vpack.c.b16 %v653, %v649
    %v714 = vpack.c.b16 %v654, %v650
    %v715 = vpack.c.b16 %v655, %v651
    %v716 = vpack.c.b16 %v656, %v652
    %v717 = vpack.c.b16 %v661, %v657
    %v718 = vpack.c.b16 %v662, %v658
    %v719 = vpack.c.b16 %v663, %v659
    %v720 = vpack.c.b16 %v664, %v660
    %v721 = vpack.c.b16 %v669, %v665
    %v722 = vpack.c.b16 %v670, %v666
    %v723 = vpack.c.b16 %v671, %v667
    %v724 = vpack.c.b16 %v672, %v668
    %v725 = vpack.c.b16 %v677, %v673
    %v726 = vpack.c.b16 %v678, %v674
    %v727 = vpack.c.b16 %v679, %v675
    %v728 = vpack.c.b16 %v680, %v676
    %v729 = vpack.c.b16 %v685, %v681
    %v730 = vpack.c.b16 %v686, %v682
    %v731 = vpack.c.b16 %v687, %v683
    %v732 = vpack.c.b16 %v688, %v684
    %v733 = vpack.c.b16 %v693, %v689
    %v734 = vpack.c.b16 %v694, %v690
    %v735 = vpack.c.b16 %v695, %v691
    %v736 = vpack.c.b16 %v696, %v692
    %v737 = vpack.c.b16 %v701, %v697
    %v738 = vpack.c.b16 %v702, %v698
    %v739 = vpack.c.b16 %v703, %v699
    %v740 = vpack.c.b16 %v704, %v700
    %v741 = vpack.c.b16 %v709, %v705
    %v742 = vpack.c.b16 %v710, %v706
    %v743 = vpack.c.b16 %v711, %v707
    %v744 = vpack.c.b16 %v712, %v708
    %777 = vmatpush.bf16.msra.mxu0 %v741
    %778 = vmatpush.bf16.msra.mxu0 %v737
    %779 = vmatpush.bf16.msra.mxu0 %v733
    %780 = vmatpush.bf16.msra.mxu0 %v729
    %781 = vmatpush.bf16.msra.mxu0 %v725
    %782 = vmatpush.bf16.msra.mxu0 %v721
    %783 = vmatpush.bf16.msra.mxu0 %v717
    %784 = vmatpush.bf16.msra.mxu0 %v713
    %785 = vmatmul.bf16.gmra.mxu0 %v611
    %v786 = vpop.f32.mrf.mxu0
    %v787 = vadd.f32 0.0, %v786
    %v788 = vpop.f32.mrf.mxu0
    %789 = vdwg.mxu0
    %790 = vmatpush.bf16.msra.mxu0 %v742
    %791 = vmatpush.bf16.msra.mxu0 %v738
    %792 = vmatpush.bf16.msra.mxu0 %v734
    %793 = vmatpush.bf16.msra.mxu0 %v730
    %794 = vmatpush.bf16.msra.mxu0 %v726
    %795 = vmatpush.bf16.msra.mxu0 %v722
    %796 = vmatpush.bf16.msra.mxu0 %v718
    %797 = vmatpush.bf16.msra.mxu0 %v714
    %798 = vmatmul.bf16.gmra.mxu0 %v611
    %v799 = vpop.f32.mrf.mxu0
    %v800 = vadd.f32 0.0, %v799
    %v801 = vpop.f32.mrf.mxu0
    %802 = vdwg.mxu0
    %803 = vmatpush.bf16.msra.mxu0 %v743
    %804 = vmatpush.bf16.msra.mxu0 %v739
    %805 = vmatpush.bf16.msra.mxu0 %v735
    %806 = vmatpush.bf16.msra.mxu0 %v731
    %807 = vmatpush.bf16.msra.mxu0 %v727
    %808 = vmatpush.bf16.msra.mxu0 %v723
    %809 = vmatpush.bf16.msra.mxu0 %v719
    %810 = vmatpush.bf16.msra.mxu0 %v715
    %811 = vmatmul.bf16.gmra.mxu0 %v611
    %v812 = vpop.f32.mrf.mxu0
    %v813 = vadd.f32 0.0, %v812
    %v814 = vpop.f32.mrf.mxu0
    %815 = vdwg.mxu0
    %816 = vmatpush.bf16.msra.mxu0 %v744
    %817 = vmatpush.bf16.msra.mxu0 %v740
    %818 = vmatpush.bf16.msra.mxu0 %v736
    %819 = vmatpush.bf16.msra.mxu0 %v732
    %820 = vmatpush.bf16.msra.mxu0 %v728
    %821 = vmatpush.bf16.msra.mxu0 %v724
    %822 = vmatpush.bf16.msra.mxu0 %v720
    %823 = vmatpush.bf16.msra.mxu0 %v716
    %824 = vmatmul.bf16.gmra.mxu0 %v611
    %v825 = vpop.f32.mrf.mxu0
    %v826 = vadd.f32 0.0, %v825
    %v827 = vpop.f32.mrf.mxu0
    %828 = vdwg.mxu0
    %v829 = vadd.f32 %v613, %v787
    %v830 = vadd.f32 %v614, %v800
    %v831 = vadd.f32 %v615, %v813
    %v832 = vadd.f32 %v616, %v826
    %v833 = vmul.f32 %v829, 0.5
    %v834 = vtanh.pop %v833
    %v835 = vmul.f32 %v834, 0.5
    %v836 = vadd.f32 %v835, 0.5
    %v837 = vmul.f32 %v830, 0.5
    %v838 = vtanh.pop %v837
    %v839 = vmul.f32 %v838, 0.5
    %v840 = vadd.f32 %v839, 0.5
    %v841 = vtanh.pop %v831
    %v842 = vmul.f32 %v832, 0.5
    %v843 = vtanh.pop %v842
    %v844 = vmul.f32 %v843, 0.5
    %v845 = vadd.f32 %v844, 0.5
    %v846 = vmul.f32 %v840, %v612
    %v847 = vmul.f32 %v836, %v841
    %v848 = vadd.f32 %v846, %v847
    %v849 = vtanh.pop %v848
    %v850 = vmul.f32 %v845, %v849
    %v851 = vpack.c.bf16 %v850, %v850
    %852 = vst [vmem:[#allocation16] sm:$0xf] %v851
    %s853 = scalar_lea.vmem [#allocation2], 32
    %v854 = vld [vmem:[%s853] sm:$0xff]
    %v855 = vld [vmem:[%s853 + $0x8] sm:$0xff]
    %v856 = vld [vmem:[%s853 + $0x10] sm:$0xff]
    %v857 = vld [vmem:[%s853 + $0x18] sm:$0xff]
    %858 = vmatpush.bf16.msra.mxu0 %v741
    %859 = vmatpush.bf16.msra.mxu0 %v737
    %860 = vmatpush.bf16.msra.mxu0 %v733
    %861 = vmatpush.bf16.msra.mxu0 %v729
    %862 = vmatpush.bf16.msra.mxu0 %v725
    %863 = vmatpush.bf16.msra.mxu0 %v721
    %864 = vmatpush.bf16.msra.mxu0 %v717
    %865 = vmatpush.bf16.msra.mxu0 %v713
    %866 = vmatmul.bf16.gmra.mxu0 %v851
    %v867 = vpop.f32.mrf.mxu0
    %v868 = vadd.f32 0.0, %v867
    %v869 = vpop.f32.mrf.mxu0
    %870 = vdwg.mxu0
    %871 = vmatpush.bf16.msra.mxu0 %v742
    %872 = vmatpush.bf16.msra.mxu0 %v738
    %873 = vmatpush.bf16.msra.mxu0 %v734
    %874 = vmatpush.bf16.msra.mxu0 %v730
    %875 = vmatpush.bf16.msra.mxu0 %v726
    %876 = vmatpush.bf16.msra.mxu0 %v722
    %877 = vmatpush.bf16.msra.mxu0 %v718
    %878 = vmatpush.bf16.msra.mxu0 %v714
    %879 = vmatmul.bf16.gmra.mxu0 %v851
    %v880 = vpop.f32.mrf.mxu0
    %v881 = vadd.f32 0.0, %v880
    %v882 = vpop.f32.mrf.mxu0
    %883 = vdwg.mxu0
    %884 = vmatpush.bf16.msra.mxu0 %v743
    %885 = vmatpush.bf16.msra.mxu0 %v739
    %886 = vmatpush.bf16.msra.mxu0 %v735
    %887 = vmatpush.bf16.msra.mxu0 %v731
    %888 = vmatpush.bf16.msra.mxu0 %v727
    %889 = vmatpush.bf16.msra.mxu0 %v723
    %890 = vmatpush.bf16.msra.mxu0 %v719
    %891 = vmatpush.bf16.msra.mxu0 %v715
    %892 = vmatmul.bf16.gmra.mxu0 %v851
    %v893 = vpop.f32.mrf.mxu0
    %v894 = vadd.f32 0.0, %v893
    %v895 = vpop.f32.mrf.mxu0
    %896 = vdwg.mxu0
    %897 = vmatpush.bf16.msra.mxu0 %v744
    %898 = vmatpush.bf16.msra.mxu0 %v740
    %899 = vmatpush.bf16.msra.mxu0 %v736
    %900 = vmatpush.bf16.msra.mxu0 %v732
    %901 = vmatpush.bf16.msra.mxu0 %v728
    %902 = vmatpush.bf16.msra.mxu0 %v724
    %903 = vmatpush.bf16.msra.mxu0 %v720
    %904 = vmatpush.bf16.msra.mxu0 %v716
    %905 = vmatmul.bf16.gmra.mxu0 %v851
    %v906 = vpop.f32.mrf.mxu0
    %v907 = vadd.f32 0.0, %v906
    %v908 = vpop.f32.mrf.mxu0
    %909 = vdwg.mxu0
    %v910 = vadd.f32 %v854, %v868
    %v911 = vadd.f32 %v855, %v881
    %v912 = vadd.f32 %v856, %v894
    %v913 = vadd.f32 %v857, %v907
    %v914 = vmul.f32 %v910, 0.5
    %v915 = vtanh.pop %v914
    %v916 = vmul.f32 %v915, 0.5
    %v917 = vadd.f32 %v916, 0.5
    %v918 = vmul.f32 %v911, 0.5
    %v919 = vtanh.pop %v918
    %v920 = vmul.f32 %v919, 0.5
    %v921 = vadd.f32 %v920, 0.5
    %v922 = vtanh.pop %v912
    %v923 = vmul.f32 %v913, 0.5
    %v924 = vtanh.pop %v923
    %v925 = vmul.f32 %v924, 0.5
    %v926 = vadd.f32 %v925, 0.5
    %v927 = vmul.f32 %v921, %v848
    %v928 = vmul.f32 %v917, %v922
    %v929 = vadd.f32 %v927, %v928
    %v930 = vtanh.pop %v929
    %v931 = vmul.f32 %v926, %v930
    %v932 = vpack.c.bf16 %v931, %v931
    %s933 = scalar_lea.vmem [#allocation16], 4
    %934 = vst [vmem:[%s933] sm:$0xf] %v932
    %s935 = scalar_lea.vmem [#allocation2], 64
    %v936 = vld [vmem:[%s935] sm:$0xff]
    %v937 = vld [vmem:[%s935 + $0x8] sm:$0xff]
    %v938 = vld [vmem:[%s935 + $0x10] sm:$0xff]
    %v939 = vld [vmem:[%s935 + $0x18] sm:$0xff]
    %940 = vmatpush.bf16.msra.mxu0 %v741
    %941 = vmatpush.bf16.msra.mxu0 %v737
    %942 = vmatpush.bf16.msra.mxu0 %v733
    %943 = vmatpush.bf16.msra.mxu0 %v729
    %944 = vmatpush.bf16.msra.mxu0 %v725
    %945 = vmatpush.bf16.msra.mxu0 %v721
    %946 = vmatpush.bf16.msra.mxu0 %v717
    %947 = vmatpush.bf16.msra.mxu0 %v713
    %948 = vmatmul.bf16.gmra.mxu0 %v932
    %v949 = vpop.f32.mrf.mxu0
    %v950 = vadd.f32 0.0, %v949
    %v951 = vpop.f32.mrf.mxu0
    %952 = vdwg.mxu0
    %953 = vmatpush.bf16.msra.mxu0 %v742
    %954 = vmatpush.bf16.msra.mxu0 %v738
    %955 = vmatpush.bf16.msra.mxu0 %v734
    %956 = vmatpush.bf16.msra.mxu0 %v730
    %957 = vmatpush.bf16.msra.mxu0 %v726
    %958 = vmatpush.bf16.msra.mxu0 %v722
    %959 = vmatpush.bf16.msra.mxu0 %v718
    %960 = vmatpush.bf16.msra.mxu0 %v714
    %961 = vmatmul.bf16.gmra.mxu0 %v932
    %v962 = vpop.f32.mrf.mxu0
    %v963 = vadd.f32 0.0, %v962
    %v964 = vpop.f32.mrf.mxu0
    %965 = vdwg.mxu0
    %966 = vmatpush.bf16.msra.mxu0 %v743
    %967 = vmatpush.bf16.msra.mxu0 %v739
    %968 = vmatpush.bf16.msra.mxu0 %v735
    %969 = vmatpush.bf16.msra.mxu0 %v731
    %970 = vmatpush.bf16.msra.mxu0 %v727
    %971 = vmatpush.bf16.msra.mxu0 %v723
    %972 = vmatpush.bf16.msra.mxu0 %v719
    %973 = vmatpush.bf16.msra.mxu0 %v715
    %974 = vmatmul.bf16.gmra.mxu0 %v932
    %v975 = vpop.f32.mrf.mxu0
    %v976 = vadd.f32 0.0, %v975
    %v977 = vpop.f32.mrf.mxu0
    %978 = vdwg.mxu0
    %979 = vmatpush.bf16.msra.mxu0 %v744
    %980 = vmatpush.bf16.msra.mxu0 %v740
    %981 = vmatpush.bf16.msra.mxu0 %v736
    %982 = vmatpush.bf16.msra.mxu0 %v732
    %983 = vmatpush.bf16.msra.mxu0 %v728
    %984 = vmatpush.bf16.msra.mxu0 %v724
    %985 = vmatpush.bf16.msra.mxu0 %v720
    %986 = vmatpush.bf16.msra.mxu0 %v716
    %987 = vmatmul.bf16.gmra.mxu0 %v932
    %v988 = vpop.f32.mrf.mxu0
    %v989 = vadd.f32 0.0, %v988
    %v990 = vpop.f32.mrf.mxu0
    %991 = vdwg.mxu0
    %v992 = vadd.f32 %v936, %v950
    %v993 = vadd.f32 %v937, %v963
    %v994 = vadd.f32 %v938, %v976
    %v995 = vadd.f32 %v939, %v989
    %v996 = vmul.f32 %v992, 0.5
    %v997 = vtanh.pop %v996
    %v998 = vmul.f32 %v997, 0.5
    %v999 = vadd.f32 %v998, 0.5
    %v1000 = vmul.f32 %v993, 0.5
    %v1001 = vtanh.pop %v1000
    %v1002 = vmul.f32 %v1001, 0.5
    %v1003 = vadd.f32 %v1002, 0.5
    %v1004 = vtanh.pop %v994
    %v1005 = vmul.f32 %v995, 0.5
    %v1006 = vtanh.pop %v1005
    %v1007 = vmul.f32 %v1006, 0.5
    %v1008 = vadd.f32 %v1007, 0.5
    %v1009 = vmul.f32 %v1003, %v929
    %v1010 = vmul.f32 %v999, %v1004
    %v1011 = vadd.f32 %v1009, %v1010
    %v1012 = vtanh.pop %v1011
    %v1013 = vmul.f32 %v1008, %v1012
    %v1014 = vpack.c.bf16 %v1013, %v1013
    %s1015 = scalar_lea.vmem [#allocation16], 8
    %1016 = vst [vmem:[%s1015] sm:$0xf] %v1014
    %s1017 = scalar_lea.vmem [#allocation2], 96
    %v1018 = vld [vmem:[%s1017] sm:$0xff]
    %v1019 = vld [vmem:[%s1017 + $0x8] sm:$0xff]
    %v1020 = vld [vmem:[%s1017 + $0x10] sm:$0xff]
    %v1021 = vld [vmem:[%s1017 + $0x18] sm:$0xff]
    %1022 = vmatpush.bf16.msra.mxu0 %v741
    %1023 = vmatpush.bf16.msra.mxu0 %v737
    %1024 = vmatpush.bf16.msra.mxu0 %v733
    %1025 = vmatpush.bf16.msra.mxu0 %v729
    %1026 = vmatpush.bf16.msra.mxu0 %v725
    %1027 = vmatpush.bf16.msra.mxu0 %v721
    %1028 = vmatpush.bf16.msra.mxu0 %v717
    %1029 = vmatpush.bf16.msra.mxu0 %v713
    %1030 = vmatmul.bf16.gmra.mxu0 %v1014
    %v1031 = vpop.f32.mrf.mxu0
    %v1032 = vadd.f32 0.0, %v1031
    %v1033 = vpop.f32.mrf.mxu0
    %1034 = vdwg.mxu0
    %1035 = vmatpush.bf16.msra.mxu0 %v742
    %1036 = vmatpush.bf16.msra.mxu0 %v738
    %1037 = vmatpush.bf16.msra.mxu0 %v734
    %1038 = vmatpush.bf16.msra.mxu0 %v730
    %1039 = vmatpush.bf16.msra.mxu0 %v726
    %1040 = vmatpush.bf16.msra.mxu0 %v722
    %1041 = vmatpush.bf16.msra.mxu0 %v718
    %1042 = vmatpush.bf16.msra.mxu0 %v714
    %1043 = vmatmul.bf16.gmra.mxu0 %v1014
    %v1044 = vpop.f32.mrf.mxu0
    %v1045 = vadd.f32 0.0, %v1044
    %v1046 = vpop.f32.mrf.mxu0
    %1047 = vdwg.mxu0
    %1048 = vmatpush.bf16.msra.mxu0 %v743
    %1049 = vmatpush.bf16.msra.mxu0 %v739
    %1050 = vmatpush.bf16.msra.mxu0 %v735
    %1051 = vmatpush.bf16.msra.mxu0 %v731
    %1052 = vmatpush.bf16.msra.mxu0 %v727
    %1053 = vmatpush.bf16.msra.mxu0 %v723
    %1054 = vmatpush.bf16.msra.mxu0 %v719
    %1055 = vmatpush.bf16.msra.mxu0 %v715
    %1056 = vmatmul.bf16.gmra.mxu0 %v1014
    %v1057 = vpop.f32.mrf.mxu0
    %v1058 = vadd.f32 0.0, %v1057
    %v1059 = vpop.f32.mrf.mxu0
    %1060 = vdwg.mxu0
    %1061 = vmatpush.bf16.msra.mxu0 %v744
    %1062 = vmatpush.bf16.msra.mxu0 %v740
    %1063 = vmatpush.bf16.msra.mxu0 %v736
    %1064 = vmatpush.bf16.msra.mxu0 %v732
    %1065 = vmatpush.bf16.msra.mxu0 %v728
    %1066 = vmatpush.bf16.msra.mxu0 %v724
    %1067 = vmatpush.bf16.msra.mxu0 %v720
    %1068 = vmatpush.bf16.msra.mxu0 %v716
    %1069 = vmatmul.bf16.gmra.mxu0 %v1014
    %v1070 = vpop.f32.mrf.mxu0
    %v1071 = vadd.f32 0.0, %v1070
    %v1072 = vpop.f32.mrf.mxu0
    %1073 = vdwg.mxu0
    %v1074 = vadd.f32 %v1018, %v1032
    %v1075 = vadd.f32 %v1019, %v1045
    %v1076 = vadd.f32 %v1020, %v1058
    %v1077 = vadd.f32 %v1021, %v1071
    %v1078 = vmul.f32 %v1074, 0.5
    %v1079 = vtanh.pop %v1078
    %v1080 = vmul.f32 %v1079, 0.5
    %v1081 = vadd.f32 %v1080, 0.5
    %v1082 = vmul.f32 %v1075, 0.5
    %v1083 = vtanh.pop %v1082
    %v1084 = vmul.f32 %v1083, 0.5
    %v1085 = vadd.f32 %v1084, 0.5
    %v1086 = vtanh.pop %v1076
    %v1087 = vmul.f32 %v1077, 0.5
    %v1088 = vtanh.pop %v1087
    %v1089 = vmul.f32 %v1088, 0.5
    %v1090 = vadd.f32 %v1089, 0.5
    %v1091 = vmul.f32 %v1085, %v1011
    %v1092 = vmul.f32 %v1081, %v1086
    %v1093 = vadd.f32 %v1091, %v1092
    %v1094 = vtanh.pop %v1093
    %v1095 = vmul.f32 %v1090, %v1094
    %v1096 = vpack.c.bf16 %v1095, %v1095
    %s1097 = scalar_lea.vmem [#allocation16], 12
    %1098 = vst [vmem:[%s1097] sm:$0xf] %v1096
    %s1099 = scalar_lea.vmem [#allocation2], 128
    %v1100 = vld [vmem:[%s1099] sm:$0xff]
    %v1101 = vld [vmem:[%s1099 + $0x8] sm:$0xff]
    %v1102 = vld [vmem:[%s1099 + $0x10] sm:$0xff]
    %v1103 = vld [vmem:[%s1099 + $0x18] sm:$0xff]
    %1104 = vmatpush.bf16.msra.mxu0 %v741
    %1105 = vmatpush.bf16.msra.mxu0 %v737
    %1106 = vmatpush.bf16.msra.mxu0 %v733
    %1107 = vmatpush.bf16.msra.mxu0 %v729
    %1108 = vmatpush.bf16.msra.mxu0 %v725
    %1109 = vmatpush.bf16.msra.mxu0 %v721
    %1110 = vmatpush.bf16.msra.mxu0 %v717
    %1111 = vmatpush.bf16.msra.mxu0 %v713
    %1112 = vmatmul.bf16.gmra.mxu0 %v1096
    %v1113 = vpop.f32.mrf.mxu0
    %v1114 = vadd.f32 0.0, %v1113
    %v1115 = vpop.f32.mrf.mxu0
    %1116 = vdwg.mxu0
    %1117 = vmatpush.bf16.msra.mxu0 %v742
    %1118 = vmatpush.bf16.msra.mxu0 %v738
    %1119 = vmatpush.bf16.msra.mxu0 %v734
    %1120 = vmatpush.bf16.msra.mxu0 %v730
    %1121 = vmatpush.bf16.msra.mxu0 %v726
    %1122 = vmatpush.bf16.msra.mxu0 %v722
    %1123 = vmatpush.bf16.msra.mxu0 %v718
    %1124 = vmatpush.bf16.msra.mxu0 %v714
    %1125 = vmatmul.bf16.gmra.mxu0 %v1096
    %v1126 = vpop.f32.mrf.mxu0
    %v1127 = vadd.f32 0.0, %v1126
    %v1128 = vpop.f32.mrf.mxu0
    %1129 = vdwg.mxu0
    %1130 = vmatpush.bf16.msra.mxu0 %v743
    %1131 = vmatpush.bf16.msra.mxu0 %v739
    %1132 = vmatpush.bf16.msra.mxu0 %v735
    %1133 = vmatpush.bf16.msra.mxu0 %v731
    %1134 = vmatpush.bf16.msra.mxu0 %v727
    %1135 = vmatpush.bf16.msra.mxu0 %v723
    %1136 = vmatpush.bf16.msra.mxu0 %v719
    %1137 = vmatpush.bf16.msra.mxu0 %v715
    %1138 = vmatmul.bf16.gmra.mxu0 %v1096
    %v1139 = vpop.f32.mrf.mxu0
    %v1140 = vadd.f32 0.0, %v1139
    %v1141 = vpop.f32.mrf.mxu0
    %1142 = vdwg.mxu0
    %1143 = vmatpush.bf16.msra.mxu0 %v744
    %1144 = vmatpush.bf16.msra.mxu0 %v740
    %1145 = vmatpush.bf16.msra.mxu0 %v736
    %1146 = vmatpush.bf16.msra.mxu0 %v732
    %1147 = vmatpush.bf16.msra.mxu0 %v728
    %1148 = vmatpush.bf16.msra.mxu0 %v724
    %1149 = vmatpush.bf16.msra.mxu0 %v720
    %1150 = vmatpush.bf16.msra.mxu0 %v716
    %1151 = vmatmul.bf16.gmra.mxu0 %v1096
    %v1152 = vpop.f32.mrf.mxu0
    %v1153 = vadd.f32 0.0, %v1152
    %v1154 = vpop.f32.mrf.mxu0
    %1155 = vdwg.mxu0
    %v1156 = vadd.f32 %v1100, %v1114
    %v1157 = vadd.f32 %v1101, %v1127
    %v1158 = vadd.f32 %v1102, %v1140
    %v1159 = vadd.f32 %v1103, %v1153
    %v1160 = vmul.f32 %v1156, 0.5
    %v1161 = vtanh.pop %v1160
    %v1162 = vmul.f32 %v1161, 0.5
    %v1163 = vadd.f32 %v1162, 0.5
    %v1164 = vmul.f32 %v1157, 0.5
    %v1165 = vtanh.pop %v1164
    %v1166 = vmul.f32 %v1165, 0.5
    %v1167 = vadd.f32 %v1166, 0.5
    %v1168 = vtanh.pop %v1158
    %v1169 = vmul.f32 %v1159, 0.5
    %v1170 = vtanh.pop %v1169
    %v1171 = vmul.f32 %v1170, 0.5
    %v1172 = vadd.f32 %v1171, 0.5
    %v1173 = vmul.f32 %v1167, %v1093
    %v1174 = vmul.f32 %v1163, %v1168
    %v1175 = vadd.f32 %v1173, %v1174
    %v1176 = vtanh.pop %v1175
    %v1177 = vmul.f32 %v1172, %v1176
    %v1178 = vpack.c.bf16 %v1177, %v1177
    %s1179 = scalar_lea.vmem [#allocation16], 16
    %1180 = vst [vmem:[%s1179] sm:$0xf] %v1178
    %s1181 = scalar_lea.vmem [#allocation2], 160
    %v1182 = vld [vmem:[%s1181] sm:$0xff]
    %v1183 = vld [vmem:[%s1181 + $0x8] sm:$0xff]
    %v1184 = vld [vmem:[%s1181 + $0x10] sm:$0xff]
    %v1185 = vld [vmem:[%s1181 + $0x18] sm:$0xff]
    %1186 = vmatpush.bf16.msra.mxu0 %v741
    %1187 = vmatpush.bf16.msra.mxu0 %v737
    %1188 = vmatpush.bf16.msra.mxu0 %v733
    %1189 = vmatpush.bf16.msra.mxu0 %v729
    %1190 = vmatpush.bf16.msra.mxu0 %v725
    %1191 = vmatpush.bf16.msra.mxu0 %v721
    %1192 = vmatpush.bf16.msra.mxu0 %v717
    %1193 = vmatpush.bf16.msra.mxu0 %v713
    %1194 = vmatmul.bf16.gmra.mxu0 %v1178
    %v1195 = vpop.f32.mrf.mxu0
    %v1196 = vadd.f32 0.0, %v1195
    %v1197 = vpop.f32.mrf.mxu0
    %1198 = vdwg.mxu0
    %1199 = vmatpush.bf16.msra.mxu0 %v742
    %1200 = vmatpush.bf16.msra.mxu0 %v738
    %1201 = vmatpush.bf16.msra.mxu0 %v734
    %1202 = vmatpush.bf16.msra.mxu0 %v730
    %1203 = vmatpush.bf16.msra.mxu0 %v726
    %1204 = vmatpush.bf16.msra.mxu0 %v722
    %1205 = vmatpush.bf16.msra.mxu0 %v718
    %1206 = vmatpush.bf16.msra.mxu0 %v714
    %1207 = vmatmul.bf16.gmra.mxu0 %v1178
    %v1208 = vpop.f32.mrf.mxu0
    %v1209 = vadd.f32 0.0, %v1208
    %v1210 = vpop.f32.mrf.mxu0
    %1211 = vdwg.mxu0
    %1212 = vmatpush.bf16.msra.mxu0 %v743
    %1213 = vmatpush.bf16.msra.mxu0 %v739
    %1214 = vmatpush.bf16.msra.mxu0 %v735
    %1215 = vmatpush.bf16.msra.mxu0 %v731
    %1216 = vmatpush.bf16.msra.mxu0 %v727
    %1217 = vmatpush.bf16.msra.mxu0 %v723
    %1218 = vmatpush.bf16.msra.mxu0 %v719
    %1219 = vmatpush.bf16.msra.mxu0 %v715
    %1220 = vmatmul.bf16.gmra.mxu0 %v1178
    %v1221 = vpop.f32.mrf.mxu0
    %v1222 = vadd.f32 0.0, %v1221
    %v1223 = vpop.f32.mrf.mxu0
    %1224 = vdwg.mxu0
    %1225 = vmatpush.bf16.msra.mxu0 %v744
    %1226 = vmatpush.bf16.msra.mxu0 %v740
    %1227 = vmatpush.bf16.msra.mxu0 %v736
    %1228 = vmatpush.bf16.msra.mxu0 %v732
    %1229 = vmatpush.bf16.msra.mxu0 %v728
    %1230 = vmatpush.bf16.msra.mxu0 %v724
    %1231 = vmatpush.bf16.msra.mxu0 %v720
    %1232 = vmatpush.bf16.msra.mxu0 %v716
    %1233 = vmatmul.bf16.gmra.mxu0 %v1178
    %v1234 = vpop.f32.mrf.mxu0
    %v1235 = vadd.f32 0.0, %v1234
    %v1236 = vpop.f32.mrf.mxu0
    %1237 = vdwg.mxu0
    %v1238 = vadd.f32 %v1182, %v1196
    %v1239 = vadd.f32 %v1183, %v1209
    %v1240 = vadd.f32 %v1184, %v1222
    %v1241 = vadd.f32 %v1185, %v1235
    %v1242 = vmul.f32 %v1238, 0.5
    %v1243 = vtanh.pop %v1242
    %v1244 = vmul.f32 %v1243, 0.5
    %v1245 = vadd.f32 %v1244, 0.5
    %v1246 = vmul.f32 %v1239, 0.5
    %v1247 = vtanh.pop %v1246
    %v1248 = vmul.f32 %v1247, 0.5
    %v1249 = vadd.f32 %v1248, 0.5
    %v1250 = vtanh.pop %v1240
    %v1251 = vmul.f32 %v1241, 0.5
    %v1252 = vtanh.pop %v1251
    %v1253 = vmul.f32 %v1252, 0.5
    %v1254 = vadd.f32 %v1253, 0.5
    %v1255 = vmul.f32 %v1249, %v1175
    %v1256 = vmul.f32 %v1245, %v1250
    %v1257 = vadd.f32 %v1255, %v1256
    %v1258 = vtanh.pop %v1257
    %v1259 = vmul.f32 %v1254, %v1258
    %v1260 = vpack.c.bf16 %v1259, %v1259
    %s1261 = scalar_lea.vmem [#allocation16], 20
    %1262 = vst [vmem:[%s1261] sm:$0xf] %v1260
    %s1263 = scalar_lea.vmem [#allocation2], 192
    %v1264 = vld [vmem:[%s1263] sm:$0xff]
    %v1265 = vld [vmem:[%s1263 + $0x8] sm:$0xff]
    %v1266 = vld [vmem:[%s1263 + $0x10] sm:$0xff]
    %v1267 = vld [vmem:[%s1263 + $0x18] sm:$0xff]
    %1268 = vmatpush.bf16.msra.mxu0 %v741
    %1269 = vmatpush.bf16.msra.mxu0 %v737
    %1270 = vmatpush.bf16.msra.mxu0 %v733
    %1271 = vmatpush.bf16.msra.mxu0 %v729
    %1272 = vmatpush.bf16.msra.mxu0 %v725
    %1273 = vmatpush.bf16.msra.mxu0 %v721
    %1274 = vmatpush.bf16.msra.mxu0 %v717
    %1275 = vmatpush.bf16.msra.mxu0 %v713
    %1276 = vmatmul.bf16.gmra.mxu0 %v1260
    %v1277 = vpop.f32.mrf.mxu0
    %v1278 = vadd.f32 0.0, %v1277
    %v1279 = vpop.f32.mrf.mxu0
    %1280 = vdwg.mxu0
    %1281 = vmatpush.bf16.msra.mxu0 %v742
    %1282 = vmatpush.bf16.msra.mxu0 %v738
    %1283 = vmatpush.bf16.msra.mxu0 %v734
    %1284 = vmatpush.bf16.msra.mxu0 %v730
    %1285 = vmatpush.bf16.msra.mxu0 %v726
    %1286 = vmatpush.bf16.msra.mxu0 %v722
    %1287 = vmatpush.bf16.msra.mxu0 %v718
    %1288 = vmatpush.bf16.msra.mxu0 %v714
    %1289 = vmatmul.bf16.gmra.mxu0 %v1260
    %v1290 = vpop.f32.mrf.mxu0
    %v1291 = vadd.f32 0.0, %v1290
    %v1292 = vpop.f32.mrf.mxu0
    %1293 = vdwg.mxu0
    %1294 = vmatpush.bf16.msra.mxu0 %v743
    %1295 = vmatpush.bf16.msra.mxu0 %v739
    %1296 = vmatpush.bf16.msra.mxu0 %v735
    %1297 = vmatpush.bf16.msra.mxu0 %v731
    %1298 = vmatpush.bf16.msra.mxu0 %v727
    %1299 = vmatpush.bf16.msra.mxu0 %v723
    %1300 = vmatpush.bf16.msra.mxu0 %v719
    %1301 = vmatpush.bf16.msra.mxu0 %v715
    %1302 = vmatmul.bf16.gmra.mxu0 %v1260
    %v1303 = vpop.f32.mrf.mxu0
    %v1304 = vadd.f32 0.0, %v1303
    %v1305 = vpop.f32.mrf.mxu0
    %1306 = vdwg.mxu0
    %1307 = vmatpush.bf16.msra.mxu0 %v744
    %1308 = vmatpush.bf16.msra.mxu0 %v740
    %1309 = vmatpush.bf16.msra.mxu0 %v736
    %1310 = vmatpush.bf16.msra.mxu0 %v732
    %1311 = vmatpush.bf16.msra.mxu0 %v728
    %1312 = vmatpush.bf16.msra.mxu0 %v724
    %1313 = vmatpush.bf16.msra.mxu0 %v720
    %1314 = vmatpush.bf16.msra.mxu0 %v716
    %1315 = vmatmul.bf16.gmra.mxu0 %v1260
    %v1316 = vpop.f32.mrf.mxu0
    %v1317 = vadd.f32 0.0, %v1316
    %v1318 = vpop.f32.mrf.mxu0
    %1319 = vdwg.mxu0
    %v1320 = vadd.f32 %v1264, %v1278
    %v1321 = vadd.f32 %v1265, %v1291
    %v1322 = vadd.f32 %v1266, %v1304
    %v1323 = vadd.f32 %v1267, %v1317
    %v1324 = vmul.f32 %v1320, 0.5
    %v1325 = vtanh.pop %v1324
    %v1326 = vmul.f32 %v1325, 0.5
    %v1327 = vadd.f32 %v1326, 0.5
    %v1328 = vmul.f32 %v1321, 0.5
    %v1329 = vtanh.pop %v1328
    %v1330 = vmul.f32 %v1329, 0.5
    %v1331 = vadd.f32 %v1330, 0.5
    %v1332 = vtanh.pop %v1322
    %v1333 = vmul.f32 %v1323, 0.5
    %v1334 = vtanh.pop %v1333
    %v1335 = vmul.f32 %v1334, 0.5
    %v1336 = vadd.f32 %v1335, 0.5
    %v1337 = vmul.f32 %v1331, %v1257
    %v1338 = vmul.f32 %v1327, %v1332
    %v1339 = vadd.f32 %v1337, %v1338
    %v1340 = vtanh.pop %v1339
    %v1341 = vmul.f32 %v1336, %v1340
    %v1342 = vpack.c.bf16 %v1341, %v1341
    %s1343 = scalar_lea.vmem [#allocation16], 24
    %1344 = vst [vmem:[%s1343] sm:$0xf] %v1342
    %s1345 = scalar_lea.vmem [#allocation2], 224
    %v1346 = vld [vmem:[%s1345] sm:$0xff]
    %v1347 = vld [vmem:[%s1345 + $0x8] sm:$0xff]
    %v1348 = vld [vmem:[%s1345 + $0x10] sm:$0xff]
    %v1349 = vld [vmem:[%s1345 + $0x18] sm:$0xff]
    %1350 = vmatpush.bf16.msra.mxu0 %v741
    %1351 = vmatpush.bf16.msra.mxu0 %v737
    %1352 = vmatpush.bf16.msra.mxu0 %v733
    %1353 = vmatpush.bf16.msra.mxu0 %v729
    %1354 = vmatpush.bf16.msra.mxu0 %v725
    %1355 = vmatpush.bf16.msra.mxu0 %v721
    %1356 = vmatpush.bf16.msra.mxu0 %v717
    %1357 = vmatpush.bf16.msra.mxu0 %v713
    %1358 = vmatmul.bf16.gmra.mxu0 %v1342
    %v1359 = vpop.f32.mrf.mxu0
    %v1360 = vadd.f32 0.0, %v1359
    %v1361 = vpop.f32.mrf.mxu0
    %1362 = vdwg.mxu0
    %1363 = vmatpush.bf16.msra.mxu0 %v742
    %1364 = vmatpush.bf16.msra.mxu0 %v738
    %1365 = vmatpush.bf16.msra.mxu0 %v734
    %1366 = vmatpush.bf16.msra.mxu0 %v730
    %1367 = vmatpush.bf16.msra.mxu0 %v726
    %1368 = vmatpush.bf16.msra.mxu0 %v722
    %1369 = vmatpush.bf16.msra.mxu0 %v718
    %1370 = vmatpush.bf16.msra.mxu0 %v714
    %1371 = vmatmul.bf16.gmra.mxu0 %v1342
    %v1372 = vpop.f32.mrf.mxu0
    %v1373 = vadd.f32 0.0, %v1372
    %v1374 = vpop.f32.mrf.mxu0
    %1375 = vdwg.mxu0
    %1376 = vmatpush.bf16.msra.mxu0 %v743
    %1377 = vmatpush.bf16.msra.mxu0 %v739
    %1378 = vmatpush.bf16.msra.mxu0 %v735
    %1379 = vmatpush.bf16.msra.mxu0 %v731
    %1380 = vmatpush.bf16.msra.mxu0 %v727
    %1381 = vmatpush.bf16.msra.mxu0 %v723
    %1382 = vmatpush.bf16.msra.mxu0 %v719
    %1383 = vmatpush.bf16.msra.mxu0 %v715
    %1384 = vmatmul.bf16.gmra.mxu0 %v1342
    %v1385 = vpop.f32.mrf.mxu0
    %v1386 = vadd.f32 0.0, %v1385
    %v1387 = vpop.f32.mrf.mxu0
    %1388 = vdwg.mxu0
    %1389 = vmatpush.bf16.msra.mxu0 %v744
    %1390 = vmatpush.bf16.msra.mxu0 %v740
    %1391 = vmatpush.bf16.msra.mxu0 %v736
    %1392 = vmatpush.bf16.msra.mxu0 %v732
    %1393 = vmatpush.bf16.msra.mxu0 %v728
    %1394 = vmatpush.bf16.msra.mxu0 %v724
    %1395 = vmatpush.bf16.msra.mxu0 %v720
    %1396 = vmatpush.bf16.msra.mxu0 %v716
    %1397 = vmatmul.bf16.gmra.mxu0 %v1342
    %v1398 = vpop.f32.mrf.mxu0
    %v1399 = vadd.f32 0.0, %v1398
    %v1400 = vpop.f32.mrf.mxu0
    %1401 = vdwg.mxu0
    %v1402 = vadd.f32 %v1346, %v1360
    %v1403 = vadd.f32 %v1347, %v1373
    %v1404 = vadd.f32 %v1348, %v1386
    %v1405 = vadd.f32 %v1349, %v1399
    %v1406 = vmul.f32 %v1402, 0.5
    %v1407 = vtanh.pop %v1406
    %v1408 = vmul.f32 %v1407, 0.5
    %v1409 = vadd.f32 %v1408, 0.5
    %v1410 = vmul.f32 %v1403, 0.5
    %v1411 = vtanh.pop %v1410
    %v1412 = vmul.f32 %v1411, 0.5
    %v1413 = vadd.f32 %v1412, 0.5
    %v1414 = vtanh.pop %v1404
    %v1415 = vmul.f32 %v1405, 0.5
    %v1416 = vtanh.pop %v1415
    %v1417 = vmul.f32 %v1416, 0.5
    %v1418 = vadd.f32 %v1417, 0.5
    %v1419 = vmul.f32 %v1413, %v1339
    %v1420 = vmul.f32 %v1409, %v1414
    %v1421 = vadd.f32 %v1419, %v1420
    %v1422 = vtanh.pop %v1421
    %v1423 = vmul.f32 %v1418, %v1422
    %v1424 = vpack.c.bf16 %v1423, %v1423
    %s1425 = scalar_lea.vmem [#allocation16], 28
    %1426 = vst [vmem:[%s1425] sm:$0xf] %v1424
    %s1427 = scalar_lea.vmem [#allocation2], 256
    %v1428 = vld [vmem:[%s1427] sm:$0xff]
    %v1429 = vld [vmem:[%s1427 + $0x8] sm:$0xff]
    %v1430 = vld [vmem:[%s1427 + $0x10] sm:$0xff]
    %v1431 = vld [vmem:[%s1427 + $0x18] sm:$0xff]
    %1432 = vmatpush.bf16.msra.mxu0 %v741
    %1433 = vmatpush.bf16.msra.mxu0 %v737
    %1434 = vmatpush.bf16.msra.mxu0 %v733
    %1435 = vmatpush.bf16.msra.mxu0 %v729
    %1436 = vmatpush.bf16.msra.mxu0 %v725
    %1437 = vmatpush.bf16.msra.mxu0 %v721
    %1438 = vmatpush.bf16.msra.mxu0 %v717
    %1439 = vmatpush.bf16.msra.mxu0 %v713
    %1440 = vmatmul.bf16.gmra.mxu0 %v1424
    %v1441 = vpop.f32.mrf.mxu0
    %v1442 = vadd.f32 0.0, %v1441
    %v1443 = vpop.f32.mrf.mxu0
    %1444 = vdwg.mxu0
    %1445 = vmatpush.bf16.msra.mxu0 %v742
    %1446 = vmatpush.bf16.msra.mxu0 %v738
    %1447 = vmatpush.bf16.msra.mxu0 %v734
    %1448 = vmatpush.bf16.msra.mxu0 %v730
    %1449 = vmatpush.bf16.msra.mxu0 %v726
    %1450 = vmatpush.bf16.msra.mxu0 %v722
    %1451 = vmatpush.bf16.msra.mxu0 %v718
    %1452 = vmatpush.bf16.msra.mxu0 %v714
    %1453 = vmatmul.bf16.gmra.mxu0 %v1424
    %v1454 = vpop.f32.mrf.mxu0
    %v1455 = vadd.f32 0.0, %v1454
    %v1456 = vpop.f32.mrf.mxu0
    %1457 = vdwg.mxu0
    %1458 = vmatpush.bf16.msra.mxu0 %v743
    %1459 = vmatpush.bf16.msra.mxu0 %v739
    %1460 = vmatpush.bf16.msra.mxu0 %v735
    %1461 = vmatpush.bf16.msra.mxu0 %v731
    %1462 = vmatpush.bf16.msra.mxu0 %v727
    %1463 = vmatpush.bf16.msra.mxu0 %v723
    %1464 = vmatpush.bf16.msra.mxu0 %v719
    %1465 = vmatpush.bf16.msra.mxu0 %v715
    %1466 = vmatmul.bf16.gmra.mxu0 %v1424
    %v1467 = vpop.f32.mrf.mxu0
    %v1468 = vadd.f32 0.0, %v1467
    %v1469 = vpop.f32.mrf.mxu0
    %1470 = vdwg.mxu0
    %1471 = vmatpush.bf16.msra.mxu0 %v744
    %1472 = vmatpush.bf16.msra.mxu0 %v740
    %1473 = vmatpush.bf16.msra.mxu0 %v736
    %1474 = vmatpush.bf16.msra.mxu0 %v732
    %1475 = vmatpush.bf16.msra.mxu0 %v728
    %1476 = vmatpush.bf16.msra.mxu0 %v724
    %1477 = vmatpush.bf16.msra.mxu0 %v720
    %1478 = vmatpush.bf16.msra.mxu0 %v716
    %1479 = vmatmul.bf16.gmra.mxu0 %v1424
    %v1480 = vpop.f32.mrf.mxu0
    %v1481 = vadd.f32 0.0, %v1480
    %v1482 = vpop.f32.mrf.mxu0
    %1483 = vdwg.mxu0
    %v1484 = vadd.f32 %v1428, %v1442
    %v1485 = vadd.f32 %v1429, %v1455
    %v1486 = vadd.f32 %v1430, %v1468
    %v1487 = vadd.f32 %v1431, %v1481
    %v1488 = vmul.f32 %v1484, 0.5
    %v1489 = vtanh.pop %v1488
    %v1490 = vmul.f32 %v1489, 0.5
    %v1491 = vadd.f32 %v1490, 0.5
    %v1492 = vmul.f32 %v1485, 0.5
    %v1493 = vtanh.pop %v1492
    %v1494 = vmul.f32 %v1493, 0.5
    %v1495 = vadd.f32 %v1494, 0.5
    %v1496 = vtanh.pop %v1486
    %v1497 = vmul.f32 %v1487, 0.5
    %v1498 = vtanh.pop %v1497
    %v1499 = vmul.f32 %v1498, 0.5
    %v1500 = vadd.f32 %v1499, 0.5
    %v1501 = vmul.f32 %v1495, %v1421
    %v1502 = vmul.f32 %v1491, %v1496
    %v1503 = vadd.f32 %v1501, %v1502
    %v1504 = vtanh.pop %v1503
    %v1505 = vmul.f32 %v1500, %v1504
    %v1506 = vpack.c.bf16 %v1505, %v1505
    %s1507 = scalar_lea.vmem [#allocation16], 32
    %1508 = vst [vmem:[%s1507] sm:$0xf] %v1506
    %s1509 = scalar_lea.vmem [#allocation2], 288
    %v1510 = vld [vmem:[%s1509] sm:$0xff]
    %v1511 = vld [vmem:[%s1509 + $0x8] sm:$0xff]
    %v1512 = vld [vmem:[%s1509 + $0x10] sm:$0xff]
    %v1513 = vld [vmem:[%s1509 + $0x18] sm:$0xff]
    %1514 = vmatpush.bf16.msra.mxu0 %v741
    %1515 = vmatpush.bf16.msra.mxu0 %v737
    %1516 = vmatpush.bf16.msra.mxu0 %v733
    %1517 = vmatpush.bf16.msra.mxu0 %v729
    %1518 = vmatpush.bf16.msra.mxu0 %v725
    %1519 = vmatpush.bf16.msra.mxu0 %v721
    %1520 = vmatpush.bf16.msra.mxu0 %v717
    %1521 = vmatpush.bf16.msra.mxu0 %v713
    %1522 = vmatmul.bf16.gmra.mxu0 %v1506
    %v1523 = vpop.f32.mrf.mxu0
    %v1524 = vadd.f32 0.0, %v1523
    %v1525 = vpop.f32.mrf.mxu0
    %1526 = vdwg.mxu0
    %1527 = vmatpush.bf16.msra.mxu0 %v742
    %1528 = vmatpush.bf16.msra.mxu0 %v738
    %1529 = vmatpush.bf16.msra.mxu0 %v734
    %1530 = vmatpush.bf16.msra.mxu0 %v730
    %1531 = vmatpush.bf16.msra.mxu0 %v726
    %1532 = vmatpush.bf16.msra.mxu0 %v722
    %1533 = vmatpush.bf16.msra.mxu0 %v718
    %1534 = vmatpush.bf16.msra.mxu0 %v714
    %1535 = vmatmul.bf16.gmra.mxu0 %v1506
    %v1536 = vpop.f32.mrf.mxu0
    %v1537 = vadd.f32 0.0, %v1536
    %v1538 = vpop.f32.mrf.mxu0
    %1539 = vdwg.mxu0
    %1540 = vmatpush.bf16.msra.mxu0 %v743
    %1541 = vmatpush.bf16.msra.mxu0 %v739
    %1542 = vmatpush.bf16.msra.mxu0 %v735
    %1543 = vmatpush.bf16.msra.mxu0 %v731
    %1544 = vmatpush.bf16.msra.mxu0 %v727
    %1545 = vmatpush.bf16.msra.mxu0 %v723
    %1546 = vmatpush.bf16.msra.mxu0 %v719
    %1547 = vmatpush.bf16.msra.mxu0 %v715
    %1548 = vmatmul.bf16.gmra.mxu0 %v1506
    %v1549 = vpop.f32.mrf.mxu0
    %v1550 = vadd.f32 0.0, %v1549
    %v1551 = vpop.f32.mrf.mxu0
    %1552 = vdwg.mxu0
    %1553 = vmatpush.bf16.msra.mxu0 %v744
    %1554 = vmatpush.bf16.msra.mxu0 %v740
    %1555 = vmatpush.bf16.msra.mxu0 %v736
    %1556 = vmatpush.bf16.msra.mxu0 %v732
    %1557 = vmatpush.bf16.msra.mxu0 %v728
    %1558 = vmatpush.bf16.msra.mxu0 %v724
    %1559 = vmatpush.bf16.msra.mxu0 %v720
    %1560 = vmatpush.bf16.msra.mxu0 %v716
    %1561 = vmatmul.bf16.gmra.mxu0 %v1506
    %v1562 = vpop.f32.mrf.mxu0
    %v1563 = vadd.f32 0.0, %v1562
    %v1564 = vpop.f32.mrf.mxu0
    %1565 = vdwg.mxu0
    %v1566 = vadd.f32 %v1510, %v1524
    %v1567 = vadd.f32 %v1511, %v1537
    %v1568 = vadd.f32 %v1512, %v1550
    %v1569 = vadd.f32 %v1513, %v1563
    %v1570 = vmul.f32 %v1566, 0.5
    %v1571 = vtanh.pop %v1570
    %v1572 = vmul.f32 %v1571, 0.5
    %v1573 = vadd.f32 %v1572, 0.5
    %v1574 = vmul.f32 %v1567, 0.5
    %v1575 = vtanh.pop %v1574
    %v1576 = vmul.f32 %v1575, 0.5
    %v1577 = vadd.f32 %v1576, 0.5
    %v1578 = vtanh.pop %v1568
    %v1579 = vmul.f32 %v1569, 0.5
    %v1580 = vtanh.pop %v1579
    %v1581 = vmul.f32 %v1580, 0.5
    %v1582 = vadd.f32 %v1581, 0.5
    %v1583 = vmul.f32 %v1577, %v1503
    %v1584 = vmul.f32 %v1573, %v1578
    %v1585 = vadd.f32 %v1583, %v1584
    %v1586 = vtanh.pop %v1585
    %v1587 = vmul.f32 %v1582, %v1586
    %v1588 = vpack.c.bf16 %v1587, %v1587
    %s1589 = scalar_lea.vmem [#allocation16], 36
    %1590 = vst [vmem:[%s1589] sm:$0xf] %v1588
    %s1591 = scalar_lea.vmem [#allocation2], 320
    %v1592 = vld [vmem:[%s1591] sm:$0xff]
    %v1593 = vld [vmem:[%s1591 + $0x8] sm:$0xff]
    %v1594 = vld [vmem:[%s1591 + $0x10] sm:$0xff]
    %v1595 = vld [vmem:[%s1591 + $0x18] sm:$0xff]
    %1596 = vmatpush.bf16.msra.mxu0 %v741
    %1597 = vmatpush.bf16.msra.mxu0 %v737
    %1598 = vmatpush.bf16.msra.mxu0 %v733
    %1599 = vmatpush.bf16.msra.mxu0 %v729
    %1600 = vmatpush.bf16.msra.mxu0 %v725
    %1601 = vmatpush.bf16.msra.mxu0 %v721
    %1602 = vmatpush.bf16.msra.mxu0 %v717
    %1603 = vmatpush.bf16.msra.mxu0 %v713
    %1604 = vmatmul.bf16.gmra.mxu0 %v1588
    %v1605 = vpop.f32.mrf.mxu0
    %v1606 = vadd.f32 0.0, %v1605
    %v1607 = vpop.f32.mrf.mxu0
    %1608 = vdwg.mxu0
    %1609 = vmatpush.bf16.msra.mxu0 %v742
    %1610 = vmatpush.bf16.msra.mxu0 %v738
    %1611 = vmatpush.bf16.msra.mxu0 %v734
    %1612 = vmatpush.bf16.msra.mxu0 %v730
    %1613 = vmatpush.bf16.msra.mxu0 %v726
    %1614 = vmatpush.bf16.msra.mxu0 %v722
    %1615 = vmatpush.bf16.msra.mxu0 %v718
    %1616 = vmatpush.bf16.msra.mxu0 %v714
    %1617 = vmatmul.bf16.gmra.mxu0 %v1588
    %v1618 = vpop.f32.mrf.mxu0
    %v1619 = vadd.f32 0.0, %v1618
    %v1620 = vpop.f32.mrf.mxu0
    %1621 = vdwg.mxu0
    %1622 = vmatpush.bf16.msra.mxu0 %v743
    %1623 = vmatpush.bf16.msra.mxu0 %v739
    %1624 = vmatpush.bf16.msra.mxu0 %v735
    %1625 = vmatpush.bf16.msra.mxu0 %v731
    %1626 = vmatpush.bf16.msra.mxu0 %v727
    %1627 = vmatpush.bf16.msra.mxu0 %v723
    %1628 = vmatpush.bf16.msra.mxu0 %v719
    %1629 = vmatpush.bf16.msra.mxu0 %v715
    %1630 = vmatmul.bf16.gmra.mxu0 %v1588
    %v1631 = vpop.f32.mrf.mxu0
    %v1632 = vadd.f32 0.0, %v1631
    %v1633 = vpop.f32.mrf.mxu0
    %1634 = vdwg.mxu0
    %1635 = vmatpush.bf16.msra.mxu0 %v744
    %1636 = vmatpush.bf16.msra.mxu0 %v740
    %1637 = vmatpush.bf16.msra.mxu0 %v736
    %1638 = vmatpush.bf16.msra.mxu0 %v732
    %1639 = vmatpush.bf16.msra.mxu0 %v728
    %1640 = vmatpush.bf16.msra.mxu0 %v724
    %1641 = vmatpush.bf16.msra.mxu0 %v720
    %1642 = vmatpush.bf16.msra.mxu0 %v716
    %1643 = vmatmul.bf16.gmra.mxu0 %v1588
    %v1644 = vpop.f32.mrf.mxu0
    %v1645 = vadd.f32 0.0, %v1644
    %v1646 = vpop.f32.mrf.mxu0
    %1647 = vdwg.mxu0
    %v1648 = vadd.f32 %v1592, %v1606
    %v1649 = vadd.f32 %v1593, %v1619
    %v1650 = vadd.f32 %v1594, %v1632
    %v1651 = vadd.f32 %v1595, %v1645
    %v1652 = vmul.f32 %v1648, 0.5
    %v1653 = vtanh.pop %v1652
    %v1654 = vmul.f32 %v1653, 0.5
    %v1655 = vadd.f32 %v1654, 0.5
    %v1656 = vmul.f32 %v1649, 0.5
    %v1657 = vtanh.pop %v1656
    %v1658 = vmul.f32 %v1657, 0.5
    %v1659 = vadd.f32 %v1658, 0.5
    %v1660 = vtanh.pop %v1650
    %v1661 = vmul.f32 %v1651, 0.5
    %v1662 = vtanh.pop %v1661
    %v1663 = vmul.f32 %v1662, 0.5
    %v1664 = vadd.f32 %v1663, 0.5
    %v1665 = vmul.f32 %v1659, %v1585
    %v1666 = vmul.f32 %v1655, %v1660
    %v1667 = vadd.f32 %v1665, %v1666
    %v1668 = vtanh.pop %v1667
    %v1669 = vmul.f32 %v1664, %v1668
    %v1670 = vpack.c.bf16 %v1669, %v1669
    %s1671 = scalar_lea.vmem [#allocation16], 40
    %1672 = vst [vmem:[%s1671] sm:$0xf] %v1670
    %s1673 = scalar_lea.vmem [#allocation2], 352
    %v1674 = vld [vmem:[%s1673] sm:$0xff]
    %v1675 = vld [vmem:[%s1673 + $0x8] sm:$0xff]
    %v1676 = vld [vmem:[%s1673 + $0x10] sm:$0xff]
    %v1677 = vld [vmem:[%s1673 + $0x18] sm:$0xff]
    %1678 = vmatpush.bf16.msra.mxu0 %v741
    %1679 = vmatpush.bf16.msra.mxu0 %v737
    %1680 = vmatpush.bf16.msra.mxu0 %v733
    %1681 = vmatpush.bf16.msra.mxu0 %v729
    %1682 = vmatpush.bf16.msra.mxu0 %v725
    %1683 = vmatpush.bf16.msra.mxu0 %v721
    %1684 = vmatpush.bf16.msra.mxu0 %v717
    %1685 = vmatpush.bf16.msra.mxu0 %v713
    %1686 = vmatmul.bf16.gmra.mxu0 %v1670
    %v1687 = vpop.f32.mrf.mxu0
    %v1688 = vadd.f32 0.0, %v1687
    %v1689 = vpop.f32.mrf.mxu0
    %1690 = vdwg.mxu0
    %1691 = vmatpush.bf16.msra.mxu0 %v742
    %1692 = vmatpush.bf16.msra.mxu0 %v738
    %1693 = vmatpush.bf16.msra.mxu0 %v734
    %1694 = vmatpush.bf16.msra.mxu0 %v730
    %1695 = vmatpush.bf16.msra.mxu0 %v726
    %1696 = vmatpush.bf16.msra.mxu0 %v722
    %1697 = vmatpush.bf16.msra.mxu0 %v718
    %1698 = vmatpush.bf16.msra.mxu0 %v714
    %1699 = vmatmul.bf16.gmra.mxu0 %v1670
    %v1700 = vpop.f32.mrf.mxu0
    %v1701 = vadd.f32 0.0, %v1700
    %v1702 = vpop.f32.mrf.mxu0
    %1703 = vdwg.mxu0
    %1704 = vmatpush.bf16.msra.mxu0 %v743
    %1705 = vmatpush.bf16.msra.mxu0 %v739
    %1706 = vmatpush.bf16.msra.mxu0 %v735
    %1707 = vmatpush.bf16.msra.mxu0 %v731
    %1708 = vmatpush.bf16.msra.mxu0 %v727
    %1709 = vmatpush.bf16.msra.mxu0 %v723
    %1710 = vmatpush.bf16.msra.mxu0 %v719
    %1711 = vmatpush.bf16.msra.mxu0 %v715
    %1712 = vmatmul.bf16.gmra.mxu0 %v1670
    %v1713 = vpop.f32.mrf.mxu0
    %v1714 = vadd.f32 0.0, %v1713
    %v1715 = vpop.f32.mrf.mxu0
    %1716 = vdwg.mxu0
    %1717 = vmatpush.bf16.msra.mxu0 %v744
    %1718 = vmatpush.bf16.msra.mxu0 %v740
    %1719 = vmatpush.bf16.msra.mxu0 %v736
    %1720 = vmatpush.bf16.msra.mxu0 %v732
    %1721 = vmatpush.bf16.msra.mxu0 %v728
    %1722 = vmatpush.bf16.msra.mxu0 %v724
    %1723 = vmatpush.bf16.msra.mxu0 %v720
    %1724 = vmatpush.bf16.msra.mxu0 %v716
    %1725 = vmatmul.bf16.gmra.mxu0 %v1670
    %v1726 = vpop.f32.mrf.mxu0
    %v1727 = vadd.f32 0.0, %v1726
    %v1728 = vpop.f32.mrf.mxu0
    %1729 = vdwg.mxu0
    %v1730 = vadd.f32 %v1674, %v1688
    %v1731 = vadd.f32 %v1675, %v1701
    %v1732 = vadd.f32 %v1676, %v1714
    %v1733 = vadd.f32 %v1677, %v1727
    %v1734 = vmul.f32 %v1730, 0.5
    %v1735 = vtanh.pop %v1734
    %v1736 = vmul.f32 %v1735, 0.5
    %v1737 = vadd.f32 %v1736, 0.5
    %v1738 = vmul.f32 %v1731, 0.5
    %v1739 = vtanh.pop %v1738
    %v1740 = vmul.f32 %v1739, 0.5
    %v1741 = vadd.f32 %v1740, 0.5
    %v1742 = vtanh.pop %v1732
    %v1743 = vmul.f32 %v1733, 0.5
    %v1744 = vtanh.pop %v1743
    %v1745 = vmul.f32 %v1744, 0.5
    %v1746 = vadd.f32 %v1745, 0.5
    %v1747 = vmul.f32 %v1741, %v1667
    %v1748 = vmul.f32 %v1737, %v1742
    %v1749 = vadd.f32 %v1747, %v1748
    %v1750 = vtanh.pop %v1749
    %v1751 = vmul.f32 %v1746, %v1750
    %v1752 = vpack.c.bf16 %v1751, %v1751
    %s1753 = scalar_lea.vmem [#allocation16], 44
    %1754 = vst [vmem:[%s1753] sm:$0xf] %v1752
    %1755 = vst [vmem:[#allocation3] sm:$0xf] %v1752
    %1756 = vst [vmem:[#allocation4] sm:$0xff] %v1749
    // Predicated region
    $region54: #{tpu_custom_call.1} parent=1 // pred_check
      %p1757 = pneg %p116
    $region55: #{tpu_custom_call.1} parent=1 // pred_check_branch
      %1759 = sbr.rel (%p1757) target = $region57
    $region56: #{tpu_custom_call.1} parent=1 // pred_region
      %v1760 = vunpack.c.l.bf16 %v1752
      %1761 = vst [vmem:[#allocation17] sm:$0xff] %v1760
      %1762 = vst [vmem:[#allocation19] sm:$0xff] %v1749
    $region57: #{tpu_custom_call.1} parent=1 // pred_fallthru
      _
    // Predicated region
    $region58: #{tpu_custom_call.1} parent=1 // pred_check
      _
    $region59: #{tpu_custom_call.1} parent=1 // pred_check_branch
      %1764 = sbr.rel (0) target = $region61
    $region60: #{tpu_custom_call.1} parent=1 // pred_region
      %1766 = vsyncadd [#allocation7], 0
      %s1767 = sshll.u32 [#allocation16], 4
      %s1768 = int_to_ptr.vmem [resolvable:$true] %s1767
      %s1769 = sshll.u32 %s6, 4
      %s1770 = int_to_ptr.hbm [resolvable:$true] %s1769
      %1775 = dma.vmem_to_hbm [thread:$0]  %s1768, 768, %s1770, [#allocation7], 64, 64, 4
    $region61: #{tpu_custom_call.1} parent=1 // pred_fallthru
      _
    // Predicated region
    $region62: #{tpu_custom_call.1} parent=1 // pred_check
      _
    $region63: #{tpu_custom_call.1} parent=1 // pred_check_branch
      %1777 = sbr.rel (0) target = $region65
    $region64: #{tpu_custom_call.1} parent=1 // pred_region
      %1779 = vsyncadd [#allocation18], 0
      %s1781 = sshll.u32 [#allocation17], 4
      %s1782 = int_to_ptr.vmem [resolvable:$true] %s1781
      %s1783 = sshll.u32 %s7, 4
      %s1784 = int_to_ptr.hbm [resolvable:$true] %s1783
      %1786 = dma.vmem_to_hbm [thread:$0]  %s1782, 128, %s1784, [#allocation18]
    $region65: #{tpu_custom_call.1} parent=1 // pred_fallthru
      _
    // Predicated region
    $region66: #{tpu_custom_call.1} parent=1 // pred_check
      _
    $region67: #{tpu_custom_call.1} parent=1 // pred_check_branch
      %1788 = sbr.rel (0) target = $region69
    $region68: #{tpu_custom_call.1} parent=1 // pred_region
      %1790 = vsyncadd [#allocation18], 0
      %s1792 = sshll.u32 [#allocation19], 4
      %s1793 = int_to_ptr.vmem [resolvable:$true] %s1792
      %s1794 = sshll.u32 %s8, 4
      %s1795 = int_to_ptr.hbm [resolvable:$true] %s1794
      %1797 = dma.vmem_to_hbm [thread:$0]  %s1793, 128, %s1795, [#allocation18]
    $region69: #{tpu_custom_call.1} parent=1 // pred_fallthru
      _
    // Predicated region
    $region70: #{tpu_custom_call.1} parent=1 // pred_check
      _
    $region71: #{tpu_custom_call.1} parent=1 // pred_check_branch
      %1799 = sbr.rel (0) target = $region73
    $region72: #{tpu_custom_call.1} parent=1 // pred_region
      %1801 = dma.done [#allocation7], 768
    $region73: #{tpu_custom_call.1} parent=1 // pred_fallthru
      _
    // Predicated region
    $region74: #{tpu_custom_call.1} parent=1 // pred_check
      _
    $region75: #{tpu_custom_call.1} parent=1 // pred_check_branch
      %1803 = sbr.rel (0) target = $region77
    $region76: #{tpu_custom_call.1} parent=1 // pred_region
      %1805 = dma.done [#allocation18], 128
    $region77: #{tpu_custom_call.1} parent=1 // pred_fallthru
      _
    // Predicated region
    $region78: #{tpu_custom_call.1} parent=1 // pred_check
      _
    $region79: #{tpu_custom_call.1} parent=1 // pred_check_branch
      %1807 = sbr.rel (0) target = $region81
    $region80: #{tpu_custom_call.1} parent=1 // pred_region
      %1809 = dma.done [#allocation18], 128
    $region81: #{tpu_custom_call.1} parent=1 // pred_fallthru
      _
    %1810 = vsyncpa [#allocation6], 1
    %1811 = vsyncpa [#allocation9], 1
    %1812 = vsyncpa [#allocation12], 1
    %1813 = vsyncpa [#allocation15], 1
    %1814 = vsyncpa [#allocation7], 1
    %1815 = vsyncpa [#allocation18], 1

</llo_original>
